<compile_context>
chip_gen: v5e
topology: v5e:2x2
jax: 0.10.0
libtpu: 0.0.40
codegen_flags: <defaults>
</compile_context>

<pallas_src>
import math

import jax
import jax.numpy as jnp
from jax.experimental import pallas as pl
from jax.experimental.pallas import tpu as pltpu


# ------------------------------ small helpers ------------------------------ #

def _round_up(x, m):
    return ((x + m - 1) // m) * m


def _pick_tile(m, t_max):
    """Lane-tile size: a multiple of 128 (unless m <= 128), <= t_max, and at
    least 2 grid steps whenever m allows so dual-TensorCore parts (v7x) get
    parallel work.  Non-divisible m is handled with a ragged last tile."""
    if m <= 128:
        return m
    t = min(t_max, _round_up(m, 128))
    if t >= m:                                   # would be a single grid step
        t = _round_up(pl.cdiv(m, 2), 128)
    return t


def _vmem_limit_bytes(per_step_bytes):
    """Explicit scoped-VMEM limit: >= 2x the per-step working set, but never
    more than 3/4 of this generation's physical VMEM (64 MiB on v7x,
    128 MiB on v5e/v6e)."""
    try:
        phys = int(pltpu.get_tpu_info().vmem_capacity_bytes)
    except Exception:
        phys = 64 * 1024 * 1024                  # conservative (v7x per-core)
    return int(min(max(2 * per_step_bytes, 32 * 1024 * 1024), phys * 3 // 4))


# ----------------------------- Pallas kernels ------------------------------ #

def _conv_pool_kernel(w_ref, b_ref, s_ref, o_ref):
    """Fused conv-as-matmul + bias + 2x2 max-pool + ReLU on one (Cout, TM) tile.

    s_ref:  (K, TM)      shared dedup slice matrix tile (bf16)
    w_ref:  (4, Cout, K) conv weights scattered per 2x2 pool offset (bf16)
    Four MXU pushes share the same VMEM-resident RHS; their elementwise max
    is the max-pool, so the un-pooled conv output never touches HBM.
    """
    s = s_ref[...]
    y = jnp.dot(w_ref[0], s, preferred_element_type=jnp.float32)
    y = jnp.maximum(y, jnp.dot(w_ref[1], s, preferred_element_type=jnp.float32))
    y = jnp.maximum(y, jnp.dot(w_ref[2], s, preferred_element_type=jnp.float32))
    y = jnp.maximum(y, jnp.dot(w_ref[3], s, preferred_element_type=jnp.float32))
    o_ref[...] = jnp.maximum(y + b_ref[...], 0.0).astype(jnp.bfloat16)


def _fc_head_kernel(w1_ref, b1_ref, w2_ref, b2_ref, x_ref, o_ref):
    """fc1 -> ReLU -> (dropout = identity) -> fc2 -> log_softmax, (C, N) layout."""
    h = jnp.dot(w1_ref[...], x_ref[...], preferred_element_type=jnp.float32)
    h = jnp.maximum(h + b1_ref[...], 0.0)                       # (50, TN) f32
    logits = jnp.dot(w2_ref[...], h.astype(jnp.bfloat16),
                     preferred_element_type=jnp.float32) + b2_ref[...]
    m = jnp.max(logits, axis=0, keepdims=True)                  # over classes
    sh = logits - m
    lse = jnp.log(jnp.sum(jnp.exp(sh), axis=0, keepdims=True))
    o_ref[...] = sh - lse


# ----------------------------- kernel wrappers ------------------------------ #

def _conv_pool(slices, w_exp, b, *, tm_max=2048):
    """slices: (K, M) bf16; w_exp: (4, Cout, K) bf16; b: (Cout,) f32.
    Returns relu(maxpool2(conv(x)) + b) as a (Cout, M) bf16 array."""
    K, M = slices.shape
    _, cout, _ = w_exp.shape
    tm = _pick_tile(M, tm_max)
    grid = (pl.cdiv(M, tm),)

    flops = 2 * 4 * cout * K * M + 6 * cout * M
    bytes_accessed = K * M * 2 + 4 * cout * K * 2 + cout * 4 + cout * M * 2
    per_step = (2 * (K * tm * 2 + cout * tm * 2)       # double-buffered in/out
                + 4 * cout * K * 2 + cout * 4          # resident weights/bias
                + 4 * cout * tm * 4)                   # f32 temporaries

    return pl.pallas_call(
        _conv_pool_kernel,
        out_shape=jax.ShapeDtypeStruct((cout, M), jnp.bfloat16),
        grid=grid,
        in_specs=[
            pl.BlockSpec((4, cout, K), lambda i: (0, 0, 0)),   # weights (VMEM-resident)
            pl.BlockSpec((cout, 1), lambda i: (0, 0)),         # bias
            pl.BlockSpec((K, tm), lambda i: (0, i)),           # shared slice matrix
        ],
        out_specs=pl.BlockSpec((cout, tm), lambda i: (0, i)),
        compiler_params=pltpu.CompilerParams(
            dimension_semantics=("parallel",),
            vmem_limit_bytes=_vmem_limit_bytes(per_step)),
        cost_estimate=pl.CostEstimate(flops=flops, transcendentals=0,
                                      bytes_accessed=bytes_accessed),
    )(w_exp, b.reshape(cout, 1).astype(jnp.float32), slices)


def _fc_head(flat_t, fw1, fb1, fw2, fb2, *, tn_max=2048):
    """flat_t: (320, N).  Returns (10, N) f32 log-probabilities."""
    din, n = flat_t.shape
    hdim = fw1.shape[0]
    ncls = fw2.shape[0]
    tn = _pick_tile(n, tn_max)
    grid = (pl.cdiv(n, tn),)

    flops = 2 * n * (hdim * din + ncls * hdim) + 8 * n * ncls
    bytes_accessed = (din * n + hdim * din + ncls * hdim) * 2 + ncls * n * 4
    per_step = (2 * (din * tn * 2 + ncls * tn * 4)
                + (hdim * din + ncls * hdim) * 2 + (hdim + ncls) * 4
                + 3 * hdim * tn * 4)

    return pl.pallas_call(
        _fc_head_kernel,
        out_shape=jax.ShapeDtypeStruct((ncls, n), jnp.float32),
        grid=grid,
        in_specs=[
            pl.BlockSpec((hdim, din), lambda i: (0, 0)),
            pl.BlockSpec((hdim, 1), lambda i: (0, 0)),
            pl.BlockSpec((ncls, hdim), lambda i: (0, 0)),
            pl.BlockSpec((ncls, 1), lambda i: (0, 0)),
            pl.BlockSpec((din, tn), lambda i: (0, i)),
        ],
        out_specs=pl.BlockSpec((ncls, tn), lambda i: (0, i)),
        compiler_params=pltpu.CompilerParams(
            dimension_semantics=("parallel",),
            vmem_limit_bytes=_vmem_limit_bytes(per_step)),
        cost_estimate=pl.CostEstimate(flops=flops, transcendentals=11 * n,
                                      bytes_accessed=bytes_accessed),
    )(fw1.astype(jnp.bfloat16), fb1.reshape(hdim, 1).astype(jnp.float32),
      fw2.astype(jnp.bfloat16), fb2.reshape(ncls, 1).astype(jnp.float32),
      flat_t.astype(jnp.bfloat16))


# ------------------------------- JAX glue ---------------------------------- #
# Dedup pool-phase decomposition: for pool offset (di,dj) and conv tap (kh,kw),
# the needed input sample is x[n, 2i+di+kh, 2j+dj+kw].  Writing di+kh = 2q+a,
# dj+kw = 2p+b, this is phase-plane (a,b) = x[:, a::2, b::2] at contiguous
# window origin (q,p).  Only 36 distinct slices (a,b ∈ {0,1}; q,p ∈ {0,1,2})
# exist per input channel, shared by all four pool offsets; the conv weights
# are scattered into per-offset (Cout, 36*Cin) matrices instead.

def _pool_offset_selectors():
    """(4, 25, 36) 0/1 matrices mapping conv tap (kh,kw) to the dedup slice
    index ((a*2+b)*3+q)*3+p, one matrix per 2x2 pool offset (di,dj)."""
    sel = [[[0.0] * 36 for _ in range(25)] for _ in range(4)]
    for di in range(2):
        for dj in range(2):
            for kh in range(5):
                for kw in range(5):
                    a, q = (di + kh) % 2, (di + kh) // 2
                    b, p = (dj + kw) % 2, (dj + kw) // 2
                    sel[di * 2 + dj][kh * 5 + kw][((a * 2 + b) * 3 + q) * 3 + p] = 1.0
    return jnp.asarray(sel, dtype=jnp.float32)


def _slices_conv1(x, kp):
    """x: (N, 28, 28) bf16 -> (kp, N*144) dedup slice matrix; columns (n,i,j).
    K padding (36 -> kp) is folded into the stack as zero rows."""
    n = x.shape[0]
    rows = []
    for a in range(2):
        for b in range(2):
            ph = x[:, a::2, b::2]                               # (N, 14, 14)
            for q in range(3):
                for p in range(3):
                    rows.append(ph[:, q:q + 12, p:p + 12].reshape(n * 144))
    rows.extend([jnp.zeros((n * 144,), x.dtype)] * (kp - len(rows)))
    return jnp.stack(rows, axis=0)                              # (kp, N*144)


def _slices_conv2(y1r):
    """y1r: (10, N, 12, 12) bf16 -> (360, 16*N) dedup slice matrix.
    Row = ci*36 + slice index; columns ordered (h, w, n) so conv2's pooled
    output reshapes straight into PyTorch's x.view(-1, 320) ordering."""
    n = y1r.shape[1]
    slabs = []
    for a in range(2):
        for b in range(2):
            ph = y1r[:, :, a::2, b::2]                          # (10, N, 6, 6)
            for q in range(3):
                for p in range(3):
                    win = ph[:, :, q:q + 4, p:p + 4]            # (10, N, 4, 4)
                    slabs.append(jnp.transpose(win, (0, 2, 3, 1)).reshape(10, 16 * n))
    return jnp.stack(slabs, axis=1).reshape(360, 16 * n)        # (360, 16*N)


def _expand_conv1_weights(w1, sel, kp):
    wf = w1.reshape(10, 25)
    w_exp = jnp.einsum('ck,okd->ocd', wf, sel)                  # (4, 10, 36)
    w_exp = jnp.pad(w_exp, ((0, 0), (0, 0), (0, kp - 36)))
    return w_exp.astype(jnp.bfloat16)                           # (4, 10, kp)


def _expand_conv2_weights(w2, sel):
    wf = w2.reshape(20, 10, 25)
    w_exp = jnp.einsum('cik,okd->ocid', wf, sel)                # (4, 20, 10, 36)
    return w_exp.reshape(4, 20, 360).astype(jnp.bfloat16)       # (4, 20, 360)


def init_params(key):
    """Deterministic PyTorch-shaped parameters (uniform +-1/sqrt(fan_in))."""
    ks = jax.random.split(key, 8)

    def u(k, shape, fan_in):
        bound = 1.0 / math.sqrt(fan_in)
        return jax.random.uniform(k, shape, jnp.float32, -bound, bound)

    w1 = u(ks[0], (10, 1, 5, 5), 1 * 5 * 5)     # conv1.weight
    b1 = u(ks[1], (10,), 1 * 5 * 5)             # conv1.bias
    w2 = u(ks[2], (20, 10, 5, 5), 10 * 5 * 5)   # conv2.weight
    b2 = u(ks[3], (20,), 10 * 5 * 5)            # conv2.bias
    fw1 = u(ks[4], (50, 320), 320)              # fc1.weight
    fb1 = u(ks[5], (50,), 320)                  # fc1.bias
    fw2 = u(ks[6], (10, 50), 50)                # fc2.weight
    fb2 = u(ks[7], (10,), 50)                   # fc2.bias
    return dict(w1=w1, b1=b1, w2=w2, b2=b2, fw1=fw1, fb1=fb1, fw2=fw2, fb2=fb2)


@jax.jit
def convnet_forward(x_nchw, params):
    n = x_nchw.shape[0]
    x = x_nchw.reshape(n, 28, 28).astype(jnp.bfloat16)          # Cin=1 squeezed

    sel = _pool_offset_selectors()

    # conv1 (5x5) + bias + maxpool2 + ReLU, fused -> (10, N*144)
    kp1 = 40                                                    # 36 slices, padded to 8k
    s1 = _slices_conv1(x, kp1)
    w1e = _expand_conv1_weights(params["w1"], sel, kp1)
    y1 = _conv_pool(s1, w1e, params["b1"])                      # (10, N*144) bf16
    y1r = y1.reshape(10, n, 12, 12)                             # (C, N, H, W)

    # conv2 (5x5) + (Dropout2d = identity) + bias + maxpool2 + ReLU, fused.
    s2 = _slices_conv2(y1r)                                     # (360, 16*N)
    w2e = _expand_conv2_weights(params["w2"], sel)              # (4, 20, 360)
    y2 = _conv_pool(s2, w2e, params["b2"])                      # (20, 16*N) bf16
    flat_t = y2.reshape(320, n)                                 # row = c*16 + h*4 + w

    # fc1 -> ReLU -> (dropout = identity) -> fc2 -> log_softmax, fused
    logp_t = _fc_head(flat_t, params["fw1"], params["fb1"],
                      params["fw2"], params["fb2"])             # (10, N) f32
    return jnp.transpose(logp_t)                                # (N, 10)


if __name__ == "__main__":
    key = jax.random.PRNGKey(0)
    k_in, k_par = jax.random.split(key)

    x = jax.random.normal(k_in, (2, 1, 28, 28), dtype=jnp.float32)   # NCHW input
    params = init_params(k_par)

    out = jax.block_until_ready(convnet_forward(x, params))

    assert out.shape == (2, 10)
    assert bool(jnp.all(jnp.isfinite(out)))
    # log_softmax rows must exponentiate-sum to ~1
    row_sums = jnp.sum(jnp.exp(out), axis=-1)
    assert bool(jnp.all(jnp.abs(row_sums - 1.0) < 1e-4))

    print("KERNEL_OK")
</pallas_src>

<mosaic_0001>
module attributes {stable_mosaic.version = 11 : i64} {
  func.func @_conv_pool_kernel(%arg0: i32, %arg1: memref<4x10x40xbf16, #tpu.memory_space<vmem>>, %arg2: memref<10x1xf32, #tpu.memory_space<vmem>>, %arg3: memref<40x256xbf16, #tpu.memory_space<vmem>>, %arg4: memref<10x256xbf16, #tpu.memory_space<vmem>>) attributes {dimension_semantics = [#tpu.dimension_semantics<parallel>], iteration_bounds = array<i64: 2>, scalar_prefetch = 0 : i64, scratch_operands = 0 : i64, tpu.core_type = #tpu.core_type<tc>, window_params = [{pipeline_mode = #tpu.pipeline_mode<synchronous>, transform_indices = @transform_0, window_bounds = array<i64: 4, 10, 40>}, {pipeline_mode = #tpu.pipeline_mode<synchronous>, transform_indices = @transform_1, window_bounds = array<i64: 10, 1>}, {transform_indices = @transform_2, window_bounds = array<i64: 40, 256>}, {transform_indices = @transform_3, window_bounds = array<i64: 10, 256>}]} {
    %c0 = arith.constant 0 : index
    %c0_0 = arith.constant 0 : index
    %0 = vector.load %arg3[%c0, %c0_0] : memref<40x256xbf16, #tpu.memory_space<vmem>>, vector<40x256xbf16>
    %c0_1 = arith.constant 0 : index
    %c0_2 = arith.constant 0 : index
    %c0_3 = arith.constant 0 : index
    %1 = vector.load %arg1[%c0_1, %c0_2, %c0_3] : memref<4x10x40xbf16, #tpu.memory_space<vmem>>, vector<1x10x40xbf16>
    %2 = vector.shape_cast %1 : vector<1x10x40xbf16> to vector<10x40xbf16>
    %cst = arith.constant dense<0.000000e+00> : vector<10x256xf32>
    %3 = tpu.matmul %2, %0, %cst {dimension_numbers = #tpu.dot_dimension_numbers<[1], [0], [0], [1], [0, 0, 1, 1], [], []>} : vector<10x40xbf16>, vector<40x256xbf16>, vector<10x256xf32> -> vector<10x256xf32>
    %c1 = arith.constant 1 : index
    %c0_4 = arith.constant 0 : index
    %c0_5 = arith.constant 0 : index
    %4 = vector.load %arg1[%c1, %c0_4, %c0_5] : memref<4x10x40xbf16, #tpu.memory_space<vmem>>, vector<1x10x40xbf16>
    %5 = vector.shape_cast %4 : vector<1x10x40xbf16> to vector<10x40xbf16>
    %cst_6 = arith.constant dense<0.000000e+00> : vector<10x256xf32>
    %6 = tpu.matmul %5, %0, %cst_6 {dimension_numbers = #tpu.dot_dimension_numbers<[1], [0], [0], [1], [0, 0, 1, 1], [], []>} : vector<10x40xbf16>, vector<40x256xbf16>, vector<10x256xf32> -> vector<10x256xf32>
    %7 = arith.maximumf %3, %6 : vector<10x256xf32>
    %c2 = arith.constant 2 : index
    %c0_7 = arith.constant 0 : index
    %c0_8 = arith.constant 0 : index
    %8 = vector.load %arg1[%c2, %c0_7, %c0_8] : memref<4x10x40xbf16, #tpu.memory_space<vmem>>, vector<1x10x40xbf16>
    %9 = vector.shape_cast %8 : vector<1x10x40xbf16> to vector<10x40xbf16>
    %cst_9 = arith.constant dense<0.000000e+00> : vector<10x256xf32>
    %10 = tpu.matmul %9, %0, %cst_9 {dimension_numbers = #tpu.dot_dimension_numbers<[1], [0], [0], [1], [0, 0, 1, 1], [], []>} : vector<10x40xbf16>, vector<40x256xbf16>, vector<10x256xf32> -> vector<10x256xf32>
    %11 = arith.maximumf %7, %10 : vector<10x256xf32>
    %c3 = arith.constant 3 : index
    %c0_10 = arith.constant 0 : index
    %c0_11 = arith.constant 0 : index
    %12 = vector.load %arg1[%c3, %c0_10, %c0_11] : memref<4x10x40xbf16, #tpu.memory_space<vmem>>, vector<1x10x40xbf16>
    %13 = vector.shape_cast %12 : vector<1x10x40xbf16> to vector<10x40xbf16>
    %cst_12 = arith.constant dense<0.000000e+00> : vector<10x256xf32>
    %14 = tpu.matmul %13, %0, %cst_12 {dimension_numbers = #tpu.dot_dimension_numbers<[1], [0], [0], [1], [0, 0, 1, 1], [], []>} : vector<10x40xbf16>, vector<40x256xbf16>, vector<10x256xf32> -> vector<10x256xf32>
    %15 = arith.maximumf %11, %14 : vector<10x256xf32>
    %c0_13 = arith.constant 0 : index
    %c0_14 = arith.constant 0 : index
    %16 = vector.load %arg2[%c0_13, %c0_14] : memref<10x1xf32, #tpu.memory_space<vmem>>, vector<10x1xf32>
    %17 = vector.broadcast %16 : vector<10x1xf32> to vector<10x256xf32>
    %18 = arith.addf %15, %17 : vector<10x256xf32>
    %cst_15 = arith.constant 0.000000e+00 : f32
    %19 = vector.broadcast %cst_15 : f32 to vector<10x256xf32>
    %20 = arith.maximumf %18, %19 : vector<10x256xf32>
    %21 = arith.truncf %20 : vector<10x256xf32> to vector<10x256xbf16>
    %c0_16 = arith.constant 0 : index
    %c0_17 = arith.constant 0 : index
    %22 = vector.load %arg4[%c0_16, %c0_17] : memref<10x256xbf16, #tpu.memory_space<vmem>>, vector<10x256xbf16>
    tpu.vector_store %arg4[%c0_16, %c0_17], %21 {strides = array<i32>} : memref<10x256xbf16, #tpu.memory_space<vmem>>, vector<10x256xbf16>,
    return
  }
  func.func @transform_0(%arg0: i32) -> (i32, i32, i32) {
    %c0_i32 = arith.constant 0 : i32
    %c0_i32_0 = arith.constant 0 : i32
    %c0_i32_1 = arith.constant 0 : i32
    %c0_i32_2 = arith.constant 0 : i32
    return %c0_i32, %c0_i32_0, %c0_i32_1 : i32, i32, i32
  }
  func.func @transform_1(%arg0: i32) -> (i32, i32) {
    %c0_i32 = arith.constant 0 : i32
    %c0_i32_0 = arith.constant 0 : i32
    %c0_i32_1 = arith.constant 0 : i32
    return %c0_i32, %c0_i32_0 : i32, i32
  }
  func.func @transform_2(%arg0: i32) -> (i32, i32) {
    %c0_i32 = arith.constant 0 : i32
    %c0_i32_0 = arith.constant 0 : i32
    return %c0_i32, %arg0 : i32, i32
  }
  func.func @transform_3(%arg0: i32) -> (i32, i32) {
    %c0_i32 = arith.constant 0 : i32
    %c0_i32_0 = arith.constant 0 : i32
    return %c0_i32, %arg0 : i32, i32
  }
}

module attributes {stable_mosaic.version = 11 : i64} {
  func.func @_conv_pool_kernel(%arg0: i32, %arg1: memref<4x20x360xbf16, #tpu.memory_space<vmem>>, %arg2: memref<20x1xf32, #tpu.memory_space<vmem>>, %arg3: memref<360x32xbf16, #tpu.memory_space<vmem>>, %arg4: memref<20x32xbf16, #tpu.memory_space<vmem>>) attributes {dimension_semantics = [#tpu.dimension_semantics<parallel>], iteration_bounds = array<i64: 1>, scalar_prefetch = 0 : i64, scratch_operands = 0 : i64, tpu.core_type = #tpu.core_type<tc>, window_params = [{pipeline_mode = #tpu.pipeline_mode<synchronous>, transform_indices = @transform_0, window_bounds = array<i64: 4, 20, 360>}, {pipeline_mode = #tpu.pipeline_mode<synchronous>, transform_indices = @transform_1, window_bounds = array<i64: 20, 1>}, {transform_indices = @transform_2, window_bounds = array<i64: 360, 32>}, {transform_indices = @transform_3, window_bounds = array<i64: 20, 32>}]} {
    %c0 = arith.constant 0 : index
    %c0_0 = arith.constant 0 : index
    %0 = vector.load %arg3[%c0, %c0_0] : memref<360x32xbf16, #tpu.memory_space<vmem>>, vector<360x32xbf16>
    %c0_1 = arith.constant 0 : index
    %c0_2 = arith.constant 0 : index
    %c0_3 = arith.constant 0 : index
    %1 = vector.load %arg1[%c0_1, %c0_2, %c0_3] : memref<4x20x360xbf16, #tpu.memory_space<vmem>>, vector<1x20x360xbf16>
    %2 = vector.shape_cast %1 : vector<1x20x360xbf16> to vector<20x360xbf16>
    %cst = arith.constant dense<0.000000e+00> : vector<20x32xf32>
    %3 = tpu.matmul %2, %0, %cst {dimension_numbers = #tpu.dot_dimension_numbers<[1], [0], [0], [1], [0, 0, 1, 1], [], []>} : vector<20x360xbf16>, vector<360x32xbf16>, vector<20x32xf32> -> vector<20x32xf32>
    %c1 = arith.constant 1 : index
    %c0_4 = arith.constant 0 : index
    %c0_5 = arith.constant 0 : index
    %4 = vector.load %arg1[%c1, %c0_4, %c0_5] : memref<4x20x360xbf16, #tpu.memory_space<vmem>>, vector<1x20x360xbf16>
    %5 = vector.shape_cast %4 : vector<1x20x360xbf16> to vector<20x360xbf16>
    %cst_6 = arith.constant dense<0.000000e+00> : vector<20x32xf32>
    %6 = tpu.matmul %5, %0, %cst_6 {dimension_numbers = #tpu.dot_dimension_numbers<[1], [0], [0], [1], [0, 0, 1, 1], [], []>} : vector<20x360xbf16>, vector<360x32xbf16>, vector<20x32xf32> -> vector<20x32xf32>
    %7 = arith.maximumf %3, %6 : vector<20x32xf32>
    %c2 = arith.constant 2 : index
    %c0_7 = arith.constant 0 : index
    %c0_8 = arith.constant 0 : index
    %8 = vector.load %arg1[%c2, %c0_7, %c0_8] : memref<4x20x360xbf16, #tpu.memory_space<vmem>>, vector<1x20x360xbf16>
    %9 = vector.shape_cast %8 : vector<1x20x360xbf16> to vector<20x360xbf16>
    %cst_9 = arith.constant dense<0.000000e+00> : vector<20x32xf32>
    %10 = tpu.matmul %9, %0, %cst_9 {dimension_numbers = #tpu.dot_dimension_numbers<[1], [0], [0], [1], [0, 0, 1, 1], [], []>} : vector<20x360xbf16>, vector<360x32xbf16>, vector<20x32xf32> -> vector<20x32xf32>
    %11 = arith.maximumf %7, %10 : vector<20x32xf32>
    %c3 = arith.constant 3 : index
    %c0_10 = arith.constant 0 : index
    %c0_11 = arith.constant 0 : index
    %12 = vector.load %arg1[%c3, %c0_10, %c0_11] : memref<4x20x360xbf16, #tpu.memory_space<vmem>>, vector<1x20x360xbf16>
    %13 = vector.shape_cast %12 : vector<1x20x360xbf16> to vector<20x360xbf16>
    %cst_12 = arith.constant dense<0.000000e+00> : vector<20x32xf32>
    %14 = tpu.matmul %13, %0, %cst_12 {dimension_numbers = #tpu.dot_dimension_numbers<[1], [0], [0], [1], [0, 0, 1, 1], [], []>} : vector<20x360xbf16>, vector<360x32xbf16>, vector<20x32xf32> -> vector<20x32xf32>
    %15 = arith.maximumf %11, %14 : vector<20x32xf32>
    %c0_13 = arith.constant 0 : index
    %c0_14 = arith.constant 0 : index
    %16 = vector.load %arg2[%c0_13, %c0_14] : memref<20x1xf32, #tpu.memory_space<vmem>>, vector<20x1xf32>
    %17 = vector.broadcast %16 : vector<20x1xf32> to vector<20x32xf32>
    %18 = arith.addf %15, %17 : vector<20x32xf32>
    %cst_15 = arith.constant 0.000000e+00 : f32
    %19 = vector.broadcast %cst_15 : f32 to vector<20x32xf32>
    %20 = arith.maximumf %18, %19 : vector<20x32xf32>
    %21 = arith.truncf %20 : vector<20x32xf32> to vector<20x32xbf16>
    %c0_16 = arith.constant 0 : index
    %c0_17 = arith.constant 0 : index
    %22 = vector.load %arg4[%c0_16, %c0_17] : memref<20x32xbf16, #tpu.memory_space<vmem>>, vector<20x32xbf16>
    tpu.vector_store %arg4[%c0_16, %c0_17], %21 {strides = array<i32>} : memref<20x32xbf16, #tpu.memory_space<vmem>>, vector<20x32xbf16>,
    return
  }
  func.func @transform_0(%arg0: i32) -> (i32, i32, i32) {
    %c0_i32 = arith.constant 0 : i32
    %c0_i32_0 = arith.constant 0 : i32
    %c0_i32_1 = arith.constant 0 : i32
    %c0_i32_2 = arith.constant 0 : i32
    return %c0_i32, %c0_i32_0, %c0_i32_1 : i32, i32, i32
  }
  func.func @transform_1(%arg0: i32) -> (i32, i32) {
    %c0_i32 = arith.constant 0 : i32
    %c0_i32_0 = arith.constant 0 : i32
    %c0_i32_1 = arith.constant 0 : i32
    return %c0_i32, %c0_i32_0 : i32, i32
  }
  func.func @transform_2(%arg0: i32) -> (i32, i32) {
    %c0_i32 = arith.constant 0 : i32
    %c0_i32_0 = arith.constant 0 : i32
    return %c0_i32, %arg0 : i32, i32
  }
  func.func @transform_3(%arg0: i32) -> (i32, i32) {
    %c0_i32 = arith.constant 0 : i32
    %c0_i32_0 = arith.constant 0 : i32
    return %c0_i32, %arg0 : i32, i32
  }
}

module attributes {stable_mosaic.version = 11 : i64} {
  func.func @_fc_head_kernel(%arg0: i32, %arg1: memref<50x320xbf16, #tpu.memory_space<vmem>>, %arg2: memref<50x1xf32, #tpu.memory_space<vmem>>, %arg3: memref<10x50xbf16, #tpu.memory_space<vmem>>, %arg4: memref<10x1xf32, #tpu.memory_space<vmem>>, %arg5: memref<320x2xbf16, #tpu.memory_space<vmem>>, %arg6: memref<10x2xf32, #tpu.memory_space<vmem>>) attributes {dimension_semantics = [#tpu.dimension_semantics<parallel>], iteration_bounds = array<i64: 1>, scalar_prefetch = 0 : i64, scratch_operands = 0 : i64, tpu.core_type = #tpu.core_type<tc>, window_params = [{pipeline_mode = #tpu.pipeline_mode<synchronous>, transform_indices = @transform_0, window_bounds = array<i64: 50, 320>}, {pipeline_mode = #tpu.pipeline_mode<synchronous>, transform_indices = @transform_1, window_bounds = array<i64: 50, 1>}, {pipeline_mode = #tpu.pipeline_mode<synchronous>, transform_indices = @transform_2, window_bounds = array<i64: 10, 50>}, {pipeline_mode = #tpu.pipeline_mode<synchronous>, transform_indices = @transform_3, window_bounds = array<i64: 10, 1>}, {transform_indices = @transform_4, window_bounds = array<i64: 320, 2>}, {transform_indices = @transform_5, window_bounds = array<i64: 10, 2>}]} {
    %c0 = arith.constant 0 : index
    %c0_0 = arith.constant 0 : index
    %0 = vector.load %arg1[%c0, %c0_0] : memref<50x320xbf16, #tpu.memory_space<vmem>>, vector<50x320xbf16>
    %c0_1 = arith.constant 0 : index
    %c0_2 = arith.constant 0 : index
    %1 = vector.load %arg5[%c0_1, %c0_2] : memref<320x2xbf16, #tpu.memory_space<vmem>>, vector<320x2xbf16>
    %cst = arith.constant dense<0.000000e+00> : vector<50x2xf32>
    %2 = tpu.matmul %0, %1, %cst {dimension_numbers = #tpu.dot_dimension_numbers<[1], [0], [0], [1], [0, 0, 1, 1], [], []>} : vector<50x320xbf16>, vector<320x2xbf16>, vector<50x2xf32> -> vector<50x2xf32>
    %c0_3 = arith.constant 0 : index
    %c0_4 = arith.constant 0 : index
    %3 = vector.load %arg2[%c0_3, %c0_4] : memref<50x1xf32, #tpu.memory_space<vmem>>, vector<50x1xf32>
    %4 = vector.broadcast %3 : vector<50x1xf32> to vector<50x2xf32>
    %5 = arith.addf %2, %4 : vector<50x2xf32>
    %cst_5 = arith.constant 0.000000e+00 : f32
    %6 = vector.broadcast %cst_5 : f32 to vector<50x2xf32>
    %7 = arith.maximumf %5, %6 : vector<50x2xf32>
    %c0_6 = arith.constant 0 : index
    %c0_7 = arith.constant 0 : index
    %8 = vector.load %arg3[%c0_6, %c0_7] : memref<10x50xbf16, #tpu.memory_space<vmem>>, vector<10x50xbf16>
    %9 = arith.truncf %7 : vector<50x2xf32> to vector<50x2xbf16>
    %cst_8 = arith.constant dense<0.000000e+00> : vector<10x2xf32>
    %10 = tpu.matmul %8, %9, %cst_8 {dimension_numbers = #tpu.dot_dimension_numbers<[1], [0], [0], [1], [0, 0, 1, 1], [], []>} : vector<10x50xbf16>, vector<50x2xbf16>, vector<10x2xf32> -> vector<10x2xf32>
    %c0_9 = arith.constant 0 : index
    %c0_10 = arith.constant 0 : index
    %11 = vector.load %arg4[%c0_9, %c0_10] : memref<10x1xf32, #tpu.memory_space<vmem>>, vector<10x1xf32>
    %12 = vector.broadcast %11 : vector<10x1xf32> to vector<10x2xf32>
    %13 = arith.addf %10, %12 : vector<10x2xf32>
    %cst_11 = arith.constant dense<0xFF800000> : vector<2xf32>
    %14 = vector.multi_reduction <maximumf>, %13, %cst_11 [0] : vector<10x2xf32> to vector<2xf32>
    %15 = vector.shape_cast %14 : vector<2xf32> to vector<1x2xf32>
    %16 = vector.broadcast %15 : vector<1x2xf32> to vector<10x2xf32>
    %17 = arith.subf %13, %16 : vector<10x2xf32>
    %18 = math.exp %17 : vector<10x2xf32>
    %cst_12 = arith.constant dense<0.000000e+00> : vector<2xf32>
    %19 = vector.multi_reduction <add>, %18, %cst_12 [0] : vector<10x2xf32> to vector<2xf32>
    %20 = vector.shape_cast %19 : vector<2xf32> to vector<1x2xf32>
    %21 = math.log %20 : vector<1x2xf32>
    %22 = vector.broadcast %21 : vector<1x2xf32> to vector<10x2xf32>
    %23 = arith.subf %17, %22 : vector<10x2xf32>
    %c0_13 = arith.constant 0 : index
    %c0_14 = arith.constant 0 : index
    %24 = vector.load %arg6[%c0_13, %c0_14] : memref<10x2xf32, #tpu.memory_space<vmem>>, vector<10x2xf32>
    tpu.vector_store %arg6[%c0_13, %c0_14], %23 {strides = array<i32>} : memref<10x2xf32, #tpu.memory_space<vmem>>, vector<10x2xf32>,
    return
  }
  func.func @transform_0(%arg0: i32) -> (i32, i32) {
    %c0_i32 = arith.constant 0 : i32
    %c0_i32_0 = arith.constant 0 : i32
    %c0_i32_1 = arith.constant 0 : i32
    return %c0_i32, %c0_i32_0 : i32, i32
  }
  func.func @transform_1(%arg0: i32) -> (i32, i32) {
    %c0_i32 = arith.constant 0 : i32
    %c0_i32_0 = arith.constant 0 : i32
    %c0_i32_1 = arith.constant 0 : i32
    return %c0_i32, %c0_i32_0 : i32, i32
  }
  func.func @transform_2(%arg0: i32) -> (i32, i32) {
    %c0_i32 = arith.constant 0 : i32
    %c0_i32_0 = arith.constant 0 : i32
    %c0_i32_1 = arith.constant 0 : i32
    return %c0_i32, %c0_i32_0 : i32, i32
  }
  func.func @transform_3(%arg0: i32) -> (i32, i32) {
    %c0_i32 = arith.constant 0 : i32
    %c0_i32_0 = arith.constant 0 : i32
    %c0_i32_1 = arith.constant 0 : i32
    return %c0_i32, %c0_i32_0 : i32, i32
  }
  func.func @transform_4(%arg0: i32) -> (i32, i32) {
    %c0_i32 = arith.constant 0 : i32
    %c0_i32_0 = arith.constant 0 : i32
    return %c0_i32, %arg0 : i32, i32
  }
  func.func @transform_5(%arg0: i32) -> (i32, i32) {
    %c0_i32 = arith.constant 0 : i32
    %c0_i32_0 = arith.constant 0 : i32
    return %c0_i32, %arg0 : i32, i32
  }
}

</mosaic_0001>

<llo_original>
// kernel: convnet_forward.3
$region0: #{convnet_forward.3}
  #allocation0 [shape = 'u32[]', space=smem, size = 0x4, offset = 0x4, fixed_abs, tag = 'smem constant byte address 0x4 - core index']
  #allocation1 [shape = 'u32[72,128]{1,0:T(1,128)}', space=vmem, size = 0x9000, scoped, tag = 'internal scratch']
  %s0 = inlined_call_operand.vmem [shape: bf16[4,10,40], index: 0, kind: input, shape index: {}]
  %s1 = inlined_call_operand.vmem [shape: f32[10,1], index: 1, kind: input, shape index: {}]
  %s2 = inlined_call_operand.vmem [shape: bf16[40,288], index: 2, kind: input, shape index: {}]
  %s3 = inlined_call_operand.vmem [shape: bf16[10,288], index: 3, kind: output, shape index: {}]
  %s4 = sld [smem:[#allocation0]]
  $region173: #{convnet_forward.3} parent=0
    _
  %s6 = ssub.s32 1, %s4
  %s7 = scalar_select 0, %s6, %s4
  $region1: #{convnet_forward.3} parent=0
    #allocation2 [shape = 'u8[40960]{0}', space=vmem, size = 0xa000, scoped, tag = 'input window, operand 2']
    #allocation3 [shape = 'u8[16384]{0}', space=vmem, size = 0x4000, scoped, tag = 'output window, operand 0']
    loop: start=0, step=1, limit=4
    $region2: #{convnet_forward.3} parent=1 // loop_pre_header
      _
    $region3: #{convnet_forward.3} parent=1 // loop_header
      %s9 = sphi 0, %s13
      %p10 = scmp.ge.s32.totalorder %s9, 4
      %s17 = sphi 0, %s17
      %s19 = sphi 0, %s17
      %s20 = sphi 0, %s19
      %s34 = sphi 0, %s20
      %s38 = sphi 0, %s38
      %s40 = sphi 0, %s38
      %s41 = sphi 0, %s40
      %s55 = sphi 0, %s41
      %s61 = sphi 0, %s63
      %s64 = sphi 0, %s61
      %s65 = sphi 0, %s64
      %s81 = sphi 0, %s65
      %s87 = sphi 0, %s89
      %s90 = sphi 0, %s87
      %s91 = sphi 0, %s90
      %s107 = sphi 0, %s91
    $region4: #{convnet_forward.3} parent=1 // loop_header_branch
      %12 = sbr.rel (%p10) target = $region8
    $region5: #{convnet_forward.3} parent=1 // loop_body
      %s14 = ssub.s32 %s9, 1
      %s15 = ssub.s32 %s9, 2
      %s16 = sadd.s32 %s9, 1
      %s18 = sadd.s32 %s17, 1
      %p21 = scmp.eq.s32.totalorder %s9, 1
      %p22 = scmp.ne.s32.totalorder %s17, %s19
      %p23 = scmp.eq.s32.totalorder %s9, 0
      %p24 = por %p22, %p23
      %p25 = scmp.ne.s32.totalorder %s17, %s19
      %p26 = scmp.eq.s32.totalorder %s14, 1
      %p27 = por %p25, %p26
      %p28 = scmp.ne.s32.totalorder %s19, %s20
      %p29 = scmp.eq.s32.totalorder %s14, 0
      %p30 = por %p28, %p29
      %p31 = scmp.ne.s32.totalorder %s19, %s20
      %p32 = scmp.eq.s32.totalorder %s15, 1
      %p33 = por %p31, %p32
      %p35 = scmp.ne.s32.totalorder %s20, %s34
      %p36 = scmp.eq.s32.totalorder %s15, 0
      %p37 = por %p35, %p36
      %s39 = sadd.s32 %s38, 1
      %p42 = scmp.eq.s32.totalorder %s9, 1
      %p43 = scmp.ne.s32.totalorder %s38, %s40
      %p44 = scmp.eq.s32.totalorder %s9, 0
      %p45 = por %p43, %p44
      %p46 = scmp.ne.s32.totalorder %s38, %s40
      %p47 = scmp.eq.s32.totalorder %s14, 1
      %p48 = por %p46, %p47
      %p49 = scmp.ne.s32.totalorder %s40, %s41
      %p50 = scmp.eq.s32.totalorder %s14, 0
      %p51 = por %p49, %p50
      %p52 = scmp.ne.s32.totalorder %s40, %s41
      %p53 = scmp.eq.s32.totalorder %s15, 1
      %p54 = por %p52, %p53
      %p56 = scmp.ne.s32.totalorder %s41, %s55
      %p57 = scmp.eq.s32.totalorder %s15, 0
      %p58 = por %p56, %p57
      %s59 = ssub.s32 %s9, %s16
      %p60 = scmp.eq.s32.totalorder %s59, 0
      %s62 = sadd.s32 %s61, 1
      %s63 = scalar_select %p60, %s61, %s62
      %p66 = pneg %p60
      %p67 = scmp.eq.s32.totalorder %s9, 1
      %p68 = por %p66, %p67
      %p69 = scmp.ne.s32.totalorder %s61, %s64
      %p70 = scmp.eq.s32.totalorder %s9, 0
      %p71 = por %p69, %p70
      %p72 = scmp.ne.s32.totalorder %s61, %s64
      %p73 = scmp.eq.s32.totalorder %s14, 1
      %p74 = por %p72, %p73
      %p75 = scmp.ne.s32.totalorder %s64, %s65
      %p76 = scmp.eq.s32.totalorder %s14, 0
      %p77 = por %p75, %p76
      %p78 = scmp.ne.s32.totalorder %s64, %s65
      %p79 = scmp.eq.s32.totalorder %s15, 1
      %p80 = por %p78, %p79
      %p82 = scmp.ne.s32.totalorder %s65, %s81
      %p83 = scmp.eq.s32.totalorder %s15, 0
      %p84 = por %p82, %p83
      %s85 = ssub.s32 %s9, %s16
      %p86 = scmp.eq.s32.totalorder %s85, 0
      %s88 = sadd.s32 %s87, 1
      %s89 = scalar_select %p86, %s87, %s88
      %p92 = pneg %p86
      %p93 = scmp.eq.s32.totalorder %s9, 1
      %p94 = por %p92, %p93
      %p95 = scmp.ne.s32.totalorder %s87, %s90
      %p96 = scmp.eq.s32.totalorder %s9, 0
      %p97 = por %p95, %p96
      %p98 = scmp.ne.s32.totalorder %s87, %s90
      %p99 = scmp.eq.s32.totalorder %s14, 1
      %p100 = por %p98, %p99
      %p101 = scmp.ne.s32.totalorder %s90, %s91
      %p102 = scmp.eq.s32.totalorder %s14, 0
      %p103 = por %p101, %p102
      %p104 = scmp.ne.s32.totalorder %s90, %s91
      %p105 = scmp.eq.s32.totalorder %s15, 1
      %p106 = por %p104, %p105
      %p108 = scmp.ne.s32.totalorder %s91, %s107
      %p109 = scmp.eq.s32.totalorder %s15, 0
      %p110 = por %p108, %p109
      %p111 = scmp.le.s32.totalorder 1, %s9
      %p112 = scmp.lt.s32.totalorder %s9, 3
      %p113 = pnand %p111, %p112
      %p114 = pneg %p113
      // Predicated region
      $region9: #{convnet_forward.3} parent=5 // pred_check
        _
      $region10: #{convnet_forward.3} parent=5 // pred_check_branch
        %116 = sbr.rel (%p113) target = $region12
      $region11: #{convnet_forward.3} parent=5 // pred_region
        %s117 = ssub.s32 %s9, 1
        // Predicated region
        $region13: #{convnet_forward.3} parent=11 // pred_check
          %p118 = pneg %p30
        $region14: #{convnet_forward.3} parent=11 // pred_check_branch
          %120 = sbr.rel (%p118) target = $region16
        $region15: #{convnet_forward.3} parent=11 // pred_region
          _
        $region16: #{convnet_forward.3} parent=11 // pred_fallthru
          _
        // Predicated region
        $region17: #{convnet_forward.3} parent=11 // pred_check
          %p121 = pneg %p51
        $region18: #{convnet_forward.3} parent=11 // pred_check_branch
          %123 = sbr.rel (%p121) target = $region20
        $region19: #{convnet_forward.3} parent=11 // pred_region
          _
        $region20: #{convnet_forward.3} parent=11 // pred_fallthru
          _
      $region12: #{convnet_forward.3} parent=5 // pred_fallthru
        _
      %p124 = scmp.lt.s32.totalorder %s9, 2
      // Predicated region
      $region21: #{convnet_forward.3} parent=5 // pred_check
        %p125 = pneg %p124
      $region22: #{convnet_forward.3} parent=5 // pred_check_branch
        %127 = sbr.rel (%p125) target = $region24
      $region23: #{convnet_forward.3} parent=5 // pred_region
        // Predicated region
        $region25: #{convnet_forward.3} parent=23 // pred_check
          %p128 = pneg %p71
        $region26: #{convnet_forward.3} parent=23 // pred_check_branch
          %130 = sbr.rel (%p128) target = $region28
        $region27: #{convnet_forward.3} parent=23 // pred_region
          %s131 = sand.u32 %s61, 1
          %s132 = sand.u32 %s61, 1
          %s133 = smul.addr %s132, 40
          %s134 = scalar_lea.vmem [#allocation2], %s133
          %s135 = smul.u32 2, %s9
          %s136 = ssub.s32 3, %s135
          %p137 = scmp.lt.s32.totalorder %s136, 2
          %s138 = scalar_select %p137, %s136, 2
          %s139 = smul.u32 20, %s138
          %p140 = scmp.ne.s32.totalorder 0, %s139
          %s141 = smul.addr %s135, 4
          %s142 = scalar_lea.vmem %s2, %s141
          %s143 = smul.u32 %s138, 4
          // Predicated region
          $region29: #{convnet_forward.3} parent=27 // pred_check
            %p144 = pneg %p140
          $region30: #{convnet_forward.3} parent=27 // pred_check_branch
            %146 = sbr.rel (%p144) target = $region32
          $region31: #{convnet_forward.3} parent=27 // pred_region
            %p147 = scmp.lt.u32.totalorder %s143, 8
            %p148 = pneg %p147
            // Predicated region
            $region33: #{convnet_forward.3} parent=31 // pred_check
              _
            $region34: #{convnet_forward.3} parent=31 // pred_check_branch
              %150 = sbr.rel (%p147) target = $region36
            $region35: #{convnet_forward.3} parent=31 // pred_region
              %s174 = sand.u32 %s143, 7
              %p175 = scmp.eq.s32.totalorder %s174, 0
              // Predicated region
              $region48: #{convnet_forward.3} parent=35 // pred_check
                %p176 = pneg %p175
              $region49: #{convnet_forward.3} parent=35 // pred_check_branch
                %178 = sbr.rel (%p176) target = $region51
              $region50: #{convnet_forward.3} parent=35 // pred_region
                %s179 = sshrl.u32 %s143, 3
                %s180 = sshrl.u32 %s179, 3
                // While loop
                $region52: #{convnet_forward.3} parent=50 // loop_pre_header
                  _
                $region53: #{convnet_forward.3} parent=50 // loop_header
                  %s182 = sphi 0, %s184
                  %p183 = scmp.ge.s32.totalorder %s182, %s180
                  %s187 = sphi 0, %s272
                  %s188 = sphi %s142, %s275
                  %s189 = sphi %s134, %s276
                $region54: #{convnet_forward.3} parent=50 // loop_header_branch
                  %186 = sbr.rel (%p183) target = $region58
                $region55: #{convnet_forward.3} parent=50 // loop_body
                  %v190 = vld [vmem:[%s188] sm:$0xff]
                  %191 = vst [vmem:[%s189] sm:$0xff] %v190
                  %v192 = vld [vmem:[%s188 + $0x8] sm:$0xff]
                  %193 = vst [vmem:[%s189 + $0x8] sm:$0xff] %v192
                  %v194 = vld [vmem:[%s188 + $0x10] sm:$0xff]
                  %195 = vst [vmem:[%s189 + $0x10] sm:$0xff] %v194
                  %v196 = vld [vmem:[%s188 + $0x18] sm:$0xff]
                  %197 = vst [vmem:[%s189 + $0x18] sm:$0xff] %v196
                  %v198 = vld [vmem:[%s188 + $0x20] sm:$0xff]
                  %199 = vst [vmem:[%s189 + $0x20] sm:$0xff] %v198
                  %v200 = vld [vmem:[%s188 + $0x28] sm:$0xff]
                  %201 = vst [vmem:[%s189 + $0x28] sm:$0xff] %v200
                  %v202 = vld [vmem:[%s188 + $0x30] sm:$0xff]
                  %203 = vst [vmem:[%s189 + $0x30] sm:$0xff] %v202
                  %v204 = vld [vmem:[%s188 + $0x38] sm:$0xff]
                  %205 = vst [vmem:[%s189 + $0x38] sm:$0xff] %v204
                  %v206 = vld [vmem:[%s188 + $0xc] sm:$0xff]
                  %207 = vst [vmem:[%s189 + $0x8] sm:$0xff] %v206
                  %v208 = vld [vmem:[%s188 + $0x14] sm:$0xff]
                  %209 = vst [vmem:[%s189 + $0x10] sm:$0xff] %v208
                  %v210 = vld [vmem:[%s188 + $0x1c] sm:$0xff]
                  %211 = vst [vmem:[%s189 + $0x18] sm:$0xff] %v210
                  %v212 = vld [vmem:[%s188 + $0x24] sm:$0xff]
                  %213 = vst [vmem:[%s189 + $0x20] sm:$0xff] %v212
                  %v214 = vld [vmem:[%s188 + $0x2c] sm:$0xff]
                  %215 = vst [vmem:[%s189 + $0x28] sm:$0xff] %v214
                  %v216 = vld [vmem:[%s188 + $0x34] sm:$0xff]
                  %217 = vst [vmem:[%s189 + $0x30] sm:$0xff] %v216
                  %v218 = vld [vmem:[%s188 + $0x3c] sm:$0xff]
                  %219 = vst [vmem:[%s189 + $0x38] sm:$0xff] %v218
                  %v220 = vld [vmem:[%s188 + $0x44] sm:$0xff]
                  %221 = vst [vmem:[%s189 + $0x40] sm:$0xff] %v220
                  %v222 = vld [vmem:[%s188 + $0x18] sm:$0xff]
                  %223 = vst [vmem:[%s189 + $0x10] sm:$0xff] %v222
                  %v224 = vld [vmem:[%s188 + $0x20] sm:$0xff]
                  %225 = vst [vmem:[%s189 + $0x18] sm:$0xff] %v224
                  %v226 = vld [vmem:[%s188 + $0x28] sm:$0xff]
                  %227 = vst [vmem:[%s189 + $0x20] sm:$0xff] %v226
                  %v228 = vld [vmem:[%s188 + $0x30] sm:$0xff]
                  %229 = vst [vmem:[%s189 + $0x28] sm:$0xff] %v228
                  %v230 = vld [vmem:[%s188 + $0x38] sm:$0xff]
                  %231 = vst [vmem:[%s189 + $0x30] sm:$0xff] %v230
                  %v232 = vld [vmem:[%s188 + $0x40] sm:$0xff]
                  %233 = vst [vmem:[%s189 + $0x38] sm:$0xff] %v232
                  %v234 = vld [vmem:[%s188 + $0x48] sm:$0xff]
                  %235 = vst [vmem:[%s189 + $0x40] sm:$0xff] %v234
                  %v236 = vld [vmem:[%s188 + $0x50] sm:$0xff]
                  %237 = vst [vmem:[%s189 + $0x48] sm:$0xff] %v236
                  %v238 = vld [vmem:[%s188 + $0x24] sm:$0xff]
                  %239 = vst [vmem:[%s189 + $0x18] sm:$0xff] %v238
                  %v240 = vld [vmem:[%s188 + $0x2c] sm:$0xff]
                  %241 = vst [vmem:[%s189 + $0x20] sm:$0xff] %v240
                  %v242 = vld [vmem:[%s188 + $0x34] sm:$0xff]
                  %243 = vst [vmem:[%s189 + $0x28] sm:$0xff] %v242
                  %v244 = vld [vmem:[%s188 + $0x3c] sm:$0xff]
                  %245 = vst [vmem:[%s189 + $0x30] sm:$0xff] %v244
                  %v246 = vld [vmem:[%s188 + $0x44] sm:$0xff]
                  %247 = vst [vmem:[%s189 + $0x38] sm:$0xff] %v246
                  %v248 = vld [vmem:[%s188 + $0x4c] sm:$0xff]
                  %249 = vst [vmem:[%s189 + $0x40] sm:$0xff] %v248
                  %v250 = vld [vmem:[%s188 + $0x54] sm:$0xff]
                  %251 = vst [vmem:[%s189 + $0x48] sm:$0xff] %v250
                  %v252 = vld [vmem:[%s188 + $0x5c] sm:$0xff]
                  %253 = vst [vmem:[%s189 + $0x50] sm:$0xff] %v252
                  %v254 = vld [vmem:[%s188 + $0x30] sm:$0xff]
                  %255 = vst [vmem:[%s189 + $0x20] sm:$0xff] %v254
                  %v256 = vld [vmem:[%s188 + $0x38] sm:$0xff]
                  %257 = vst [vmem:[%s189 + $0x28] sm:$0xff] %v256
                  %v258 = vld [vmem:[%s188 + $0x40] sm:$0xff]
                  %259 = vst [vmem:[%s189 + $0x30] sm:$0xff] %v258
                  %v260 = vld [vmem:[%s188 + $0x48] sm:$0xff]
                  %261 = vst [vmem:[%s189 + $0x38] sm:$0xff] %v260
                  %v262 = vld [vmem:[%s188 + $0x50] sm:$0xff]
                  %263 = vst [vmem:[%s189 + $0x40] sm:$0xff] %v262
                  %v264 = vld [vmem:[%s188 + $0x58] sm:$0xff]
                  %265 = vst [vmem:[%s189 + $0x48] sm:$0xff] %v264
                  %v266 = vld [vmem:[%s188 + $0x60] sm:$0xff]
                  %267 = vst [vmem:[%s189 + $0x50] sm:$0xff] %v266
                  %v268 = vld [vmem:[%s188 + $0x68] sm:$0xff]
                  %269 = vst [vmem:[%s189 + $0x58] sm:$0xff] %v268
                  %s270 = sadd.s32 1, %s187
                  %p271 = scmp.ge.s32.totalorder %s270, %s180
                  %s272 = scalar_select %p271, 0, %s270
                  %s273 = smul.u32 %s272, 64
                  %s274 = smul.u32 %s272, 64
                  %s275 = scalar_lea.vmem %s142, %s273
                  %s276 = scalar_lea.vmem %s134, %s274 [#allocation2]
                $region56: #{convnet_forward.3} parent=50 // loop_footer
                  %s184 = sadd.s32 %s182, 1
                $region57: #{convnet_forward.3} parent=50 // loop_footer_branch
                  %181 = sbr.rel target = $region53
                $region58: #{convnet_forward.3} parent=50 // loop_exit
                  _
                %s277 = sshrl.u32 %s179, 3
                %s278 = sand.u32 %s179, 7
                %s279 = smul.u32 %s277, 8
                %s280 = smul.u32 8, %s279
                %s281 = scalar_lea.vmem %s142, %s280
                %s282 = smul.u32 8, %s279
                %s283 = scalar_lea.vmem %s134, %s282 [#allocation2]
                // While loop
                $region59: #{convnet_forward.3} parent=50 // loop_pre_header
                  _
                $region60: #{convnet_forward.3} parent=50 // loop_header
                  %s285 = sphi 0, %s287
                  %p286 = scmp.ge.s32.totalorder %s285, %s278
                  %s290 = sphi 0, %s305
                  %s291 = sphi %s281, %s308
                  %s292 = sphi %s283, %s309
                $region61: #{convnet_forward.3} parent=50 // loop_header_branch
                  %289 = sbr.rel (%p286) target = $region65
                $region62: #{convnet_forward.3} parent=50 // loop_body
                  %v293 = vld [vmem:[%s291] sm:$0xff]
                  %294 = vst [vmem:[%s292] sm:$0xff] %v293
                  %v295 = vld [vmem:[%s291 + $0xc] sm:$0xff]
                  %296 = vst [vmem:[%s292 + $0x8] sm:$0xff] %v295
                  %v297 = vld [vmem:[%s291 + $0x18] sm:$0xff]
                  %298 = vst [vmem:[%s292 + $0x10] sm:$0xff] %v297
                  %v299 = vld [vmem:[%s291 + $0x24] sm:$0xff]
                  %300 = vst [vmem:[%s292 + $0x18] sm:$0xff] %v299
                  %v301 = vld [vmem:[%s291 + $0x30] sm:$0xff]
                  %302 = vst [vmem:[%s292 + $0x20] sm:$0xff] %v301
                  %s303 = sadd.s32 1, %s290
                  %p304 = scmp.ge.s32.totalorder %s303, %s278
                  %s305 = scalar_select %p304, 0, %s303
                  %s306 = smul.u32 %s305, 8
                  %s307 = smul.u32 %s305, 8
                  %s308 = scalar_lea.vmem %s281, %s306
                  %s309 = scalar_lea.vmem %s283, %s307 [#allocation2]
                $region63: #{convnet_forward.3} parent=50 // loop_footer
                  %s287 = sadd.s32 %s285, 1
                $region64: #{convnet_forward.3} parent=50 // loop_footer_branch
                  %284 = sbr.rel target = $region60
                $region65: #{convnet_forward.3} parent=50 // loop_exit
                  _
              $region51: #{convnet_forward.3} parent=35 // pred_fallthru
                _
              %p310 = pneg %p175
              // Predicated region
              $region66: #{convnet_forward.3} parent=35 // pred_check
                _
              $region67: #{convnet_forward.3} parent=35 // pred_check_branch
                %312 = sbr.rel (%p175) target = $region69
              $region68: #{convnet_forward.3} parent=35 // pred_region
                %s313 = sand.u32 %s143, 7
                %s314 = ssub.s32 %s143, %s313
                %s315 = scalar_lea.vmem %s142, %s314
                %s316 = ssub.s32 %s143, %s313
                %s317 = scalar_lea.vmem %s134, %s316 [#allocation2]
                %s318 = sshrl.u32 %s143, 3
                %s319 = sshrl.u32 %s318, 3
                // While loop
                $region70: #{convnet_forward.3} parent=68 // loop_pre_header
                  _
                $region71: #{convnet_forward.3} parent=68 // loop_header
                  %s321 = sphi 0, %s323
                  %p322 = scmp.ge.s32.totalorder %s321, %s319
                  %s326 = sphi 0, %s411
                  %s327 = sphi %s142, %s414
                  %s328 = sphi %s134, %s415
                $region72: #{convnet_forward.3} parent=68 // loop_header_branch
                  %325 = sbr.rel (%p322) target = $region76
                $region73: #{convnet_forward.3} parent=68 // loop_body
                  %v329 = vld [vmem:[%s327] sm:$0xff]
                  %330 = vst [vmem:[%s328] sm:$0xff] %v329
                  %v331 = vld [vmem:[%s327 + $0x8] sm:$0xff]
                  %332 = vst [vmem:[%s328 + $0x8] sm:$0xff] %v331
                  %v333 = vld [vmem:[%s327 + $0x10] sm:$0xff]
                  %334 = vst [vmem:[%s328 + $0x10] sm:$0xff] %v333
                  %v335 = vld [vmem:[%s327 + $0x18] sm:$0xff]
                  %336 = vst [vmem:[%s328 + $0x18] sm:$0xff] %v335
                  %v337 = vld [vmem:[%s327 + $0x20] sm:$0xff]
                  %338 = vst [vmem:[%s328 + $0x20] sm:$0xff] %v337
                  %v339 = vld [vmem:[%s327 + $0x28] sm:$0xff]
                  %340 = vst [vmem:[%s328 + $0x28] sm:$0xff] %v339
                  %v341 = vld [vmem:[%s327 + $0x30] sm:$0xff]
                  %342 = vst [vmem:[%s328 + $0x30] sm:$0xff] %v341
                  %v343 = vld [vmem:[%s327 + $0x38] sm:$0xff]
                  %344 = vst [vmem:[%s328 + $0x38] sm:$0xff] %v343
                  %v345 = vld [vmem:[%s327 + $0xc] sm:$0xff]
                  %346 = vst [vmem:[%s328 + $0x8] sm:$0xff] %v345
                  %v347 = vld [vmem:[%s327 + $0x14] sm:$0xff]
                  %348 = vst [vmem:[%s328 + $0x10] sm:$0xff] %v347
                  %v349 = vld [vmem:[%s327 + $0x1c] sm:$0xff]
                  %350 = vst [vmem:[%s328 + $0x18] sm:$0xff] %v349
                  %v351 = vld [vmem:[%s327 + $0x24] sm:$0xff]
                  %352 = vst [vmem:[%s328 + $0x20] sm:$0xff] %v351
                  %v353 = vld [vmem:[%s327 + $0x2c] sm:$0xff]
                  %354 = vst [vmem:[%s328 + $0x28] sm:$0xff] %v353
                  %v355 = vld [vmem:[%s327 + $0x34] sm:$0xff]
                  %356 = vst [vmem:[%s328 + $0x30] sm:$0xff] %v355
                  %v357 = vld [vmem:[%s327 + $0x3c] sm:$0xff]
                  %358 = vst [vmem:[%s328 + $0x38] sm:$0xff] %v357
                  %v359 = vld [vmem:[%s327 + $0x44] sm:$0xff]
                  %360 = vst [vmem:[%s328 + $0x40] sm:$0xff] %v359
                  %v361 = vld [vmem:[%s327 + $0x18] sm:$0xff]
                  %362 = vst [vmem:[%s328 + $0x10] sm:$0xff] %v361
                  %v363 = vld [vmem:[%s327 + $0x20] sm:$0xff]
                  %364 = vst [vmem:[%s328 + $0x18] sm:$0xff] %v363
                  %v365 = vld [vmem:[%s327 + $0x28] sm:$0xff]
                  %366 = vst [vmem:[%s328 + $0x20] sm:$0xff] %v365
                  %v367 = vld [vmem:[%s327 + $0x30] sm:$0xff]
                  %368 = vst [vmem:[%s328 + $0x28] sm:$0xff] %v367
                  %v369 = vld [vmem:[%s327 + $0x38] sm:$0xff]
                  %370 = vst [vmem:[%s328 + $0x30] sm:$0xff] %v369
                  %v371 = vld [vmem:[%s327 + $0x40] sm:$0xff]
                  %372 = vst [vmem:[%s328 + $0x38] sm:$0xff] %v371
                  %v373 = vld [vmem:[%s327 + $0x48] sm:$0xff]
                  %374 = vst [vmem:[%s328 + $0x40] sm:$0xff] %v373
                  %v375 = vld [vmem:[%s327 + $0x50] sm:$0xff]
                  %376 = vst [vmem:[%s328 + $0x48] sm:$0xff] %v375
                  %v377 = vld [vmem:[%s327 + $0x24] sm:$0xff]
                  %378 = vst [vmem:[%s328 + $0x18] sm:$0xff] %v377
                  %v379 = vld [vmem:[%s327 + $0x2c] sm:$0xff]
                  %380 = vst [vmem:[%s328 + $0x20] sm:$0xff] %v379
                  %v381 = vld [vmem:[%s327 + $0x34] sm:$0xff]
                  %382 = vst [vmem:[%s328 + $0x28] sm:$0xff] %v381
                  %v383 = vld [vmem:[%s327 + $0x3c] sm:$0xff]
                  %384 = vst [vmem:[%s328 + $0x30] sm:$0xff] %v383
                  %v385 = vld [vmem:[%s327 + $0x44] sm:$0xff]
                  %386 = vst [vmem:[%s328 + $0x38] sm:$0xff] %v385
                  %v387 = vld [vmem:[%s327 + $0x4c] sm:$0xff]
                  %388 = vst [vmem:[%s328 + $0x40] sm:$0xff] %v387
                  %v389 = vld [vmem:[%s327 + $0x54] sm:$0xff]
                  %390 = vst [vmem:[%s328 + $0x48] sm:$0xff] %v389
                  %v391 = vld [vmem:[%s327 + $0x5c] sm:$0xff]
                  %392 = vst [vmem:[%s328 + $0x50] sm:$0xff] %v391
                  %v393 = vld [vmem:[%s327 + $0x30] sm:$0xff]
                  %394 = vst [vmem:[%s328 + $0x20] sm:$0xff] %v393
                  %v395 = vld [vmem:[%s327 + $0x38] sm:$0xff]
                  %396 = vst [vmem:[%s328 + $0x28] sm:$0xff] %v395
                  %v397 = vld [vmem:[%s327 + $0x40] sm:$0xff]
                  %398 = vst [vmem:[%s328 + $0x30] sm:$0xff] %v397
                  %v399 = vld [vmem:[%s327 + $0x48] sm:$0xff]
                  %400 = vst [vmem:[%s328 + $0x38] sm:$0xff] %v399
                  %v401 = vld [vmem:[%s327 + $0x50] sm:$0xff]
                  %402 = vst [vmem:[%s328 + $0x40] sm:$0xff] %v401
                  %v403 = vld [vmem:[%s327 + $0x58] sm:$0xff]
                  %404 = vst [vmem:[%s328 + $0x48] sm:$0xff] %v403
                  %v405 = vld [vmem:[%s327 + $0x60] sm:$0xff]
                  %406 = vst [vmem:[%s328 + $0x50] sm:$0xff] %v405
                  %v407 = vld [vmem:[%s327 + $0x68] sm:$0xff]
                  %408 = vst [vmem:[%s328 + $0x58] sm:$0xff] %v407
                  %s409 = sadd.s32 1, %s326
                  %p410 = scmp.ge.s32.totalorder %s409, %s319
                  %s411 = scalar_select %p410, 0, %s409
                  %s412 = smul.u32 %s411, 64
                  %s413 = smul.u32 %s411, 64
                  %s414 = scalar_lea.vmem %s142, %s412
                  %s415 = scalar_lea.vmem %s134, %s413 [#allocation2]
                $region74: #{convnet_forward.3} parent=68 // loop_footer
                  %s323 = sadd.s32 %s321, 1
                $region75: #{convnet_forward.3} parent=68 // loop_footer_branch
                  %320 = sbr.rel target = $region71
                $region76: #{convnet_forward.3} parent=68 // loop_exit
                  _
                %s416 = sshrl.u32 %s318, 3
                %s417 = sand.u32 %s318, 7
                %s418 = smul.u32 %s416, 8
                %s419 = smul.u32 8, %s418
                %s420 = scalar_lea.vmem %s142, %s419
                %s421 = smul.u32 8, %s418
                %s422 = scalar_lea.vmem %s134, %s421 [#allocation2]
                // While loop
                $region77: #{convnet_forward.3} parent=68 // loop_pre_header
                  _
                $region78: #{convnet_forward.3} parent=68 // loop_header
                  %s424 = sphi 0, %s426
                  %p425 = scmp.ge.s32.totalorder %s424, %s417
                  %s429 = sphi 0, %s444
                  %s430 = sphi %s420, %s447
                  %s431 = sphi %s422, %s448
                $region79: #{convnet_forward.3} parent=68 // loop_header_branch
                  %428 = sbr.rel (%p425) target = $region83
                $region80: #{convnet_forward.3} parent=68 // loop_body
                  %v432 = vld [vmem:[%s430] sm:$0xff]
                  %433 = vst [vmem:[%s431] sm:$0xff] %v432
                  %v434 = vld [vmem:[%s430 + $0xc] sm:$0xff]
                  %435 = vst [vmem:[%s431 + $0x8] sm:$0xff] %v434
                  %v436 = vld [vmem:[%s430 + $0x18] sm:$0xff]
                  %437 = vst [vmem:[%s431 + $0x10] sm:$0xff] %v436
                  %v438 = vld [vmem:[%s430 + $0x24] sm:$0xff]
                  %439 = vst [vmem:[%s431 + $0x18] sm:$0xff] %v438
                  %v440 = vld [vmem:[%s430 + $0x30] sm:$0xff]
                  %441 = vst [vmem:[%s431 + $0x20] sm:$0xff] %v440
                  %s442 = sadd.s32 1, %s429
                  %p443 = scmp.ge.s32.totalorder %s442, %s417
                  %s444 = scalar_select %p443, 0, %s442
                  %s445 = smul.u32 %s444, 8
                  %s446 = smul.u32 %s444, 8
                  %s447 = scalar_lea.vmem %s420, %s445
                  %s448 = scalar_lea.vmem %s422, %s446 [#allocation2]
                $region81: #{convnet_forward.3} parent=68 // loop_footer
                  %s426 = sadd.s32 %s424, 1
                $region82: #{convnet_forward.3} parent=68 // loop_footer_branch
                  %423 = sbr.rel target = $region78
                $region83: #{convnet_forward.3} parent=68 // loop_exit
                  _
                %s449 = sshll.u32 1, %s313
                %s450 = ssub.s32 %s449, 1
                loop: start=0, step=1, limit=1
                $region84: #{convnet_forward.3} parent=68 // loop_pre_header
                  _
                $region85: #{convnet_forward.3} parent=68 // loop_header
                  %s452 = sphi 0, %s456
                  %p453 = scmp.ge.s32.totalorder %s452, 1
                  %s457 = sphi %s315, %s315
                  %s458 = sphi %s317, %s317
                $region86: #{convnet_forward.3} parent=68 // loop_header_branch
                  %455 = sbr.rel (%p453) target = $region90
                $region87: #{convnet_forward.3} parent=68 // loop_body
                  %v459 = vld [vmem:[%s457] sm:%s450]
                  %460 = vst [vmem:[%s458] sm:%s450] %v459
                  %v461 = vld [vmem:[%s457 + $0xc] sm:%s450]
                  %462 = vst [vmem:[%s458 + $0x8] sm:%s450] %v461
                  %v463 = vld [vmem:[%s457 + $0x18] sm:%s450]
                  %464 = vst [vmem:[%s458 + $0x10] sm:%s450] %v463
                  %v465 = vld [vmem:[%s457 + $0x24] sm:%s450]
                  %466 = vst [vmem:[%s458 + $0x18] sm:%s450] %v465
                  %v467 = vld [vmem:[%s457 + $0x30] sm:%s450]
                  %468 = vst [vmem:[%s458 + $0x20] sm:%s450] %v467
                $region88: #{convnet_forward.3} parent=68 // loop_footer
                  %s456 = sadd.s32 1, %s452
                $region89: #{convnet_forward.3} parent=68 // loop_footer_branch
                  %451 = sbr.rel target = $region85
                $region90: #{convnet_forward.3} parent=68 // loop_exit
                  _
              $region69: #{convnet_forward.3} parent=35 // pred_fallthru
                _
            $region36: #{convnet_forward.3} parent=31 // pred_fallthru
              _
            // Predicated region
            $region37: #{convnet_forward.3} parent=31 // pred_check
              %p151 = pneg %p147
            $region38: #{convnet_forward.3} parent=31 // pred_check_branch
              %153 = sbr.rel (%p151) target = $region40
            $region39: #{convnet_forward.3} parent=31 // pred_region
              %s154 = sshll.u32 1, %s143
              %s155 = ssub.s32 %s154, 1
              loop: start=0, step=1, limit=1
              $region41: #{convnet_forward.3} parent=39 // loop_pre_header
                _
              $region42: #{convnet_forward.3} parent=39 // loop_header
                %s157 = sphi 0, %s161
                %p158 = scmp.ge.s32.totalorder %s157, 1
                %s162 = sphi %s142, %s142
                %s163 = sphi %s134, %s134
              $region43: #{convnet_forward.3} parent=39 // loop_header_branch
                %160 = sbr.rel (%p158) target = $region47
              $region44: #{convnet_forward.3} parent=39 // loop_body
                %v164 = vld [vmem:[%s162] sm:%s155]
                %165 = vst [vmem:[%s163] sm:%s155] %v164
                %v166 = vld [vmem:[%s162 + $0xc] sm:%s155]
                %167 = vst [vmem:[%s163 + $0x8] sm:%s155] %v166
                %v168 = vld [vmem:[%s162 + $0x18] sm:%s155]
                %169 = vst [vmem:[%s163 + $0x10] sm:%s155] %v168
                %v170 = vld [vmem:[%s162 + $0x24] sm:%s155]
                %171 = vst [vmem:[%s163 + $0x18] sm:%s155] %v170
                %v172 = vld [vmem:[%s162 + $0x30] sm:%s155]
                %173 = vst [vmem:[%s163 + $0x20] sm:%s155] %v172
              $region45: #{convnet_forward.3} parent=39 // loop_footer
                %s161 = sadd.s32 1, %s157
              $region46: #{convnet_forward.3} parent=39 // loop_footer_branch
                %156 = sbr.rel target = $region42
              $region47: #{convnet_forward.3} parent=39 // loop_exit
                _
            $region40: #{convnet_forward.3} parent=31 // pred_fallthru
              _
          $region32: #{convnet_forward.3} parent=27 // pred_fallthru
            _
          %469 = vnop
        $region28: #{convnet_forward.3} parent=23 // pred_fallthru
          _
      $region24: #{convnet_forward.3} parent=5 // pred_fallthru
        _
      %p470 = scmp.le.s32.totalorder 1, %s9
      %p471 = scmp.lt.s32.totalorder %s9, 3
      %p472 = pnand %p470, %p471
      %p473 = pneg %p472
      // Predicated region
      $region91: #{convnet_forward.3} parent=5 // pred_check
        _
      $region92: #{convnet_forward.3} parent=5 // pred_check_branch
        %475 = sbr.rel (%p472) target = $region94
      $region93: #{convnet_forward.3} parent=5 // pred_region
        %s476 = ssub.s32 %s9, 1
        %s477 = sand.u32 %s64, 1
        %s478 = sand.u32 %s64, 1
        %s479 = smul.addr %s478, 40
        %s480 = scalar_lea.vmem [#allocation2], %s479
        // Predicated region
        $region95: #{convnet_forward.3} parent=93 // pred_check
          %p481 = pneg %p77
        $region96: #{convnet_forward.3} parent=93 // pred_check_branch
          %483 = sbr.rel (%p481) target = $region98
        $region97: #{convnet_forward.3} parent=93 // pred_region
          _
        $region98: #{convnet_forward.3} parent=93 // pred_fallthru
          _
        %p484 = pneg %p30
        %p485 = pneg %p27
        %p486 = pneg %p51
        %p487 = pneg %p48
        %s488 = sand.u32 %s64, 1
        %s489 = sand.u32 %s64, 1
        %s490 = smul.addr %s489, 40
        %s491 = scalar_lea.vmem [#allocation2], %s490
        %p492 = pneg %p77
        %p493 = pneg %p74
        %p494 = pneg %p103
        %p495 = pneg %p100
        %s496 = sand.u32 %s90, 1
        %s497 = sand.u32 %s90, 1
        %s498 = smul.addr %s497, 16
        %s499 = scalar_lea.vmem [#allocation3], %s498
        %s500 = smul.u32 2, %s14
        %s501 = ssub.s32 3, %s500
        %p502 = scmp.lt.s32.totalorder %s501, 2
        %s503 = scalar_select %p502, %s501, 2
        %s504 = smul.u32 20, %s503
        %s505 = smul.u32 2, %s14
        %s506 = ssub.s32 3, %s505
        %p507 = scmp.lt.s32.totalorder %s506, 2
        %s508 = scalar_select %p507, %s506, 2
        %s509 = smul.u32 8, %s508
        %v511 = vld [vmem:[%s480] sm:$0xff]
        %v512 = vld [vmem:[%s480 + $0x8] sm:$0xff]
        %v513 = vld [vmem:[%s480 + $0x10] sm:$0xff]
        %v514 = vld [vmem:[%s480 + $0x18] sm:$0xff]
        %v515 = vld [vmem:[%s480 + $0x20] sm:$0xff]
        %v516 = vld [vmem:[%s0] sm:$0xf]
        %v517 = vld [vmem:[%s0 + $0x4] sm:$0x1]
        %v520 = vunpack.c.l.b16 %v516
        %v521 = vunpack.c.l.b16 %v517
        %v522 = vpack.c.b16 %v521, %v520
        %v528 = vunpack.c.l.b16 %v511
        %v529 = vunpack.c.h.b16 %v511
        %v530 = vunpack.c.l.b16 %v512
        %v531 = vunpack.c.h.b16 %v512
        %v532 = vunpack.c.l.b16 %v513
        %v533 = vunpack.c.h.b16 %v513
        %v534 = vunpack.c.l.b16 %v514
        %v535 = vunpack.c.h.b16 %v514
        %v536 = vunpack.c.l.b16 %v515
        %v537 = vunpack.c.h.b16 %v515
        %v538 = vpack.c.b16 %v530, %v528
        %v539 = vpack.c.b16 %v531, %v529
        %v540 = vpack.c.b16 %v534, %v532
        %v541 = vpack.c.b16 %v535, %v533
        %v542 = vpack.c.b16 %v536, %v536
        %v543 = vpack.c.b16 %v537, %v537
        %vm548 = vcmask 326656
        %v550 = vsel %vm548, %v522, 0
        %vm552 = vcmask 1043456
        %v554 = vsel %vm552, %v542, 0
        %v557 = vsel %vm552, %v543, 0
        %559 = vmatpush.bf16.msra.mxu0 0
        %560 = vmatpush.bf16.msra.mxu0 0
        %561 = vmatpush.bf16.msra.mxu0 0
        %562 = vmatpush.bf16.msra.mxu0 0
        %563 = vmatpush.bf16.msra.mxu0 0
        %564 = vmatpush.bf16.msra.mxu0 %v554
        %565 = vmatpush.bf16.msra.mxu0 %v540
        %566 = vmatpush.bf16.msra.mxu0 %v538
        %567 = vmatmul.bf16.gmra.mxu0 %v550
        %v568 = vpop.f32.mrf.mxu0
        %v569 = vadd.f32 0.0, %v568
        %v570 = vpop.f32.mrf.mxu0
        %v571 = vadd.f32 0.0, %v570
        %572 = vdwg.mxu0
        %573 = vmatpush.bf16.msra.mxu0 0
        %574 = vmatpush.bf16.msra.mxu0 0
        %575 = vmatpush.bf16.msra.mxu0 0
        %576 = vmatpush.bf16.msra.mxu0 0
        %577 = vmatpush.bf16.msra.mxu0 0
        %578 = vmatpush.bf16.msra.mxu0 %v557
        %579 = vmatpush.bf16.msra.mxu0 %v541
        %580 = vmatpush.bf16.msra.mxu0 %v539
        %581 = vmatmul.bf16.gmra.mxu0 %v550
        %v582 = vpop.f32.mrf.mxu0
        %v583 = vadd.f32 0.0, %v582
        %v584 = vpop.f32.mrf.mxu0
        %v585 = vadd.f32 0.0, %v584
        %586 = vdwg.mxu0
        %s587 = scalar_lea.vmem %s0, 8
        %v588 = vld [vmem:[%s587] sm:$0xf]
        %v589 = vld [vmem:[%s587 + $0x4] sm:$0x1]
        %v592 = vunpack.c.l.b16 %v588
        %v593 = vunpack.c.l.b16 %v589
        %v594 = vpack.c.b16 %v593, %v592
        %v596 = vsel %vm548, %v594, 0
        %598 = vmatpush.bf16.msra.mxu0 0
        %599 = vmatpush.bf16.msra.mxu0 0
        %600 = vmatpush.bf16.msra.mxu0 0
        %601 = vmatpush.bf16.msra.mxu0 0
        %602 = vmatpush.bf16.msra.mxu0 0
        %603 = vmatpush.bf16.msra.mxu0 %v554
        %604 = vmatpush.bf16.msra.mxu0 %v540
        %605 = vmatpush.bf16.msra.mxu0 %v538
        %606 = vmatmul.bf16.gmra.mxu0 %v596
        %v607 = vpop.f32.mrf.mxu0
        %v608 = vadd.f32 0.0, %v607
        %v609 = vpop.f32.mrf.mxu0
        %v610 = vadd.f32 0.0, %v609
        %611 = vdwg.mxu0
        %612 = vmatpush.bf16.msra.mxu0 0
        %613 = vmatpush.bf16.msra.mxu0 0
        %614 = vmatpush.bf16.msra.mxu0 0
        %615 = vmatpush.bf16.msra.mxu0 0
        %616 = vmatpush.bf16.msra.mxu0 0
        %617 = vmatpush.bf16.msra.mxu0 %v557
        %618 = vmatpush.bf16.msra.mxu0 %v541
        %619 = vmatpush.bf16.msra.mxu0 %v539
        %620 = vmatmul.bf16.gmra.mxu0 %v596
        %v621 = vpop.f32.mrf.mxu0
        %v622 = vadd.f32 0.0, %v621
        %v623 = vpop.f32.mrf.mxu0
        %v624 = vadd.f32 0.0, %v623
        %625 = vdwg.mxu0
        %v626 = vmax.f32 %v569, %v608
        %v627 = vmax.f32 %v583, %v622
        %v628 = vmax.f32 %v571, %v610
        %v629 = vmax.f32 %v585, %v624
        %s630 = scalar_lea.vmem %s0, 16
        %v631 = vld [vmem:[%s630] sm:$0xf]
        %v632 = vld [vmem:[%s630 + $0x4] sm:$0x1]
        %v635 = vunpack.c.l.b16 %v631
        %v636 = vunpack.c.l.b16 %v632
        %v637 = vpack.c.b16 %v636, %v635
        %v639 = vsel %vm548, %v637, 0
        %641 = vmatpush.bf16.msra.mxu0 0
        %642 = vmatpush.bf16.msra.mxu0 0
        %643 = vmatpush.bf16.msra.mxu0 0
        %644 = vmatpush.bf16.msra.mxu0 0
        %645 = vmatpush.bf16.msra.mxu0 0
        %646 = vmatpush.bf16.msra.mxu0 %v554
        %647 = vmatpush.bf16.msra.mxu0 %v540
        %648 = vmatpush.bf16.msra.mxu0 %v538
        %649 = vmatmul.bf16.gmra.mxu0 %v639
        %v650 = vpop.f32.mrf.mxu0
        %v651 = vadd.f32 0.0, %v650
        %v652 = vpop.f32.mrf.mxu0
        %v653 = vadd.f32 0.0, %v652
        %654 = vdwg.mxu0
        %655 = vmatpush.bf16.msra.mxu0 0
        %656 = vmatpush.bf16.msra.mxu0 0
        %657 = vmatpush.bf16.msra.mxu0 0
        %658 = vmatpush.bf16.msra.mxu0 0
        %659 = vmatpush.bf16.msra.mxu0 0
        %660 = vmatpush.bf16.msra.mxu0 %v557
        %661 = vmatpush.bf16.msra.mxu0 %v541
        %662 = vmatpush.bf16.msra.mxu0 %v539
        %663 = vmatmul.bf16.gmra.mxu0 %v639
        %v664 = vpop.f32.mrf.mxu0
        %v665 = vadd.f32 0.0, %v664
        %v666 = vpop.f32.mrf.mxu0
        %v667 = vadd.f32 0.0, %v666
        %668 = vdwg.mxu0
        %v669 = vmax.f32 %v626, %v651
        %v670 = vmax.f32 %v627, %v665
        %v671 = vmax.f32 %v628, %v653
        %v672 = vmax.f32 %v629, %v667
        %s673 = scalar_lea.vmem %s0, 24
        %v674 = vld [vmem:[%s673] sm:$0xf]
        %v675 = vld [vmem:[%s673 + $0x4] sm:$0x1]
        %v678 = vunpack.c.l.b16 %v674
        %v679 = vunpack.c.l.b16 %v675
        %v680 = vpack.c.b16 %v679, %v678
        %v682 = vsel %vm548, %v680, 0
        %684 = vmatpush.bf16.msra.mxu0 0
        %685 = vmatpush.bf16.msra.mxu0 0
        %686 = vmatpush.bf16.msra.mxu0 0
        %687 = vmatpush.bf16.msra.mxu0 0
        %688 = vmatpush.bf16.msra.mxu0 0
        %689 = vmatpush.bf16.msra.mxu0 %v554
        %690 = vmatpush.bf16.msra.mxu0 %v540
        %691 = vmatpush.bf16.msra.mxu0 %v538
        %692 = vmatmul.bf16.gmra.mxu0 %v682
        %v693 = vpop.f32.mrf.mxu0
        %v694 = vadd.f32 0.0, %v693
        %v695 = vpop.f32.mrf.mxu0
        %v696 = vadd.f32 0.0, %v695
        %697 = vdwg.mxu0
        %698 = vmatpush.bf16.msra.mxu0 0
        %699 = vmatpush.bf16.msra.mxu0 0
        %700 = vmatpush.bf16.msra.mxu0 0
        %701 = vmatpush.bf16.msra.mxu0 0
        %702 = vmatpush.bf16.msra.mxu0 0
        %703 = vmatpush.bf16.msra.mxu0 %v557
        %704 = vmatpush.bf16.msra.mxu0 %v541
        %705 = vmatpush.bf16.msra.mxu0 %v539
        %706 = vmatmul.bf16.gmra.mxu0 %v682
        %v707 = vpop.f32.mrf.mxu0
        %v708 = vadd.f32 0.0, %v707
        %v709 = vpop.f32.mrf.mxu0
        %v710 = vadd.f32 0.0, %v709
        %711 = vdwg.mxu0
        %v712 = vmax.f32 %v669, %v694
        %v713 = vmax.f32 %v670, %v708
        %v714 = vmax.f32 %v671, %v696
        %v715 = vmax.f32 %v672, %v710
        %v716 = vld [vmem:[%s1] sm:$0xff]
        %v717 = vld [vmem:[%s1 + $0x8] sm:$0x3]
        %719 = vset.pattern.permute.xlu0 0
        %720 = vperm.xlu0 %719, %v716
        %v721 = vpop.permute.xlu0 %720
        %724 = vset.pattern.permute.xlu0 0
        %725 = vperm.xlu0 %724, %v717
        %v726 = vpop.permute.xlu0 %725
        %v728 = vadd.f32 %v712, %v721
        %v729 = vadd.f32 %v713, %v721
        %v730 = vadd.f32 %v714, %v726
        %v731 = vadd.f32 %v715, %v726
        %v732 = vmax.f32 %v728, 0.0
        %v733 = vmax.f32 %v729, 0.0
        %v734 = vmax.f32 %v730, 0.0
        %v735 = vmax.f32 %v731, 0.0
        %v736 = vpack.c.bf16 %v733, %v732
        %v737 = vpack.c.bf16 %v735, %v734
        %738 = vst [vmem:[%s499] sm:$0xff] %v736
        %739 = vst [vmem:[%s499 + $0x8] sm:$0x11] %v737
        %s740 = sand.u32 %s90, 1
        %s741 = sand.u32 %s90, 1
        %s742 = smul.addr %s741, 16
        %s743 = scalar_lea.vmem [#allocation3], %s742
        // Predicated region
        $region99: #{convnet_forward.3} parent=93 // pred_check
          %p744 = pneg %p100
        $region100: #{convnet_forward.3} parent=93 // pred_check_branch
          %746 = sbr.rel (%p744) target = $region102
        $region101: #{convnet_forward.3} parent=93 // pred_region
          %s747 = smul.u32 2, %s14
          %s748 = ssub.s32 3, %s747
          %p749 = scmp.lt.s32.totalorder %s748, 2
          %s750 = scalar_select %p749, %s748, 2
          %s751 = smul.u32 8, %s750
          %p752 = scmp.ne.s32.totalorder 0, %s751
          %s753 = smul.addr %s747, 4
          %s754 = scalar_lea.vmem %s3, %s753
          %s755 = smul.u32 %s750, 4
          // Predicated region
          $region103: #{convnet_forward.3} parent=101 // pred_check
            %p756 = pneg %p752
          $region104: #{convnet_forward.3} parent=101 // pred_check_branch
            %758 = sbr.rel (%p756) target = $region106
          $region105: #{convnet_forward.3} parent=101 // pred_region
            %p759 = scmp.lt.u32.totalorder %s755, 8
            %p760 = pneg %p759
            // Predicated region
            $region107: #{convnet_forward.3} parent=105 // pred_check
              _
            $region108: #{convnet_forward.3} parent=105 // pred_check_branch
              %762 = sbr.rel (%p759) target = $region110
            $region109: #{convnet_forward.3} parent=105 // pred_region
              %s780 = sand.u32 %s755, 7
              %p781 = scmp.eq.s32.totalorder %s780, 0
              // Predicated region
              $region122: #{convnet_forward.3} parent=109 // pred_check
                %p782 = pneg %p781
              $region123: #{convnet_forward.3} parent=109 // pred_check_branch
                %784 = sbr.rel (%p782) target = $region125
              $region124: #{convnet_forward.3} parent=109 // pred_region
                %s785 = sshrl.u32 %s755, 3
                %s786 = sshrl.u32 %s785, 4
                // While loop
                $region126: #{convnet_forward.3} parent=124 // loop_pre_header
                  _
                $region127: #{convnet_forward.3} parent=124 // loop_header
                  %s788 = sphi 0, %s790
                  %p789 = scmp.ge.s32.totalorder %s788, %s786
                  %s793 = sphi 0, %s862
                  %s794 = sphi %s743, %s865
                  %s795 = sphi %s754, %s866
                $region128: #{convnet_forward.3} parent=124 // loop_header_branch
                  %792 = sbr.rel (%p789) target = $region132
                $region129: #{convnet_forward.3} parent=124 // loop_body
                  %v796 = vld [vmem:[%s794] sm:$0xff]
                  %797 = vst [vmem:[%s795] sm:$0xff] %v796
                  %v798 = vld [vmem:[%s794 + $0x8] sm:$0xff]
                  %799 = vst [vmem:[%s795 + $0x8] sm:$0xff] %v798
                  %v800 = vld [vmem:[%s794 + $0x10] sm:$0xff]
                  %801 = vst [vmem:[%s795 + $0x10] sm:$0xff] %v800
                  %v802 = vld [vmem:[%s794 + $0x18] sm:$0xff]
                  %803 = vst [vmem:[%s795 + $0x18] sm:$0xff] %v802
                  %v804 = vld [vmem:[%s794 + $0x20] sm:$0xff]
                  %805 = vst [vmem:[%s795 + $0x20] sm:$0xff] %v804
                  %v806 = vld [vmem:[%s794 + $0x28] sm:$0xff]
                  %807 = vst [vmem:[%s795 + $0x28] sm:$0xff] %v806
                  %v808 = vld [vmem:[%s794 + $0x30] sm:$0xff]
                  %809 = vst [vmem:[%s795 + $0x30] sm:$0xff] %v808
                  %v810 = vld [vmem:[%s794 + $0x38] sm:$0xff]
                  %811 = vst [vmem:[%s795 + $0x38] sm:$0xff] %v810
                  %v812 = vld [vmem:[%s794 + $0x40] sm:$0xff]
                  %813 = vst [vmem:[%s795 + $0x40] sm:$0xff] %v812
                  %v814 = vld [vmem:[%s794 + $0x48] sm:$0xff]
                  %815 = vst [vmem:[%s795 + $0x48] sm:$0xff] %v814
                  %v816 = vld [vmem:[%s794 + $0x50] sm:$0xff]
                  %817 = vst [vmem:[%s795 + $0x50] sm:$0xff] %v816
                  %v818 = vld [vmem:[%s794 + $0x58] sm:$0xff]
                  %819 = vst [vmem:[%s795 + $0x58] sm:$0xff] %v818
                  %v820 = vld [vmem:[%s794 + $0x60] sm:$0xff]
                  %821 = vst [vmem:[%s795 + $0x60] sm:$0xff] %v820
                  %v822 = vld [vmem:[%s794 + $0x68] sm:$0xff]
                  %823 = vst [vmem:[%s795 + $0x68] sm:$0xff] %v822
                  %v824 = vld [vmem:[%s794 + $0x70] sm:$0xff]
                  %825 = vst [vmem:[%s795 + $0x70] sm:$0xff] %v824
                  %v826 = vld [vmem:[%s794 + $0x78] sm:$0xff]
                  %827 = vst [vmem:[%s795 + $0x78] sm:$0xff] %v826
                  %v828 = vld [vmem:[%s794 + $0x8] sm:$0xff]
                  %829 = vst [vmem:[%s795 + $0xc] sm:$0xff] %v828
                  %v830 = vld [vmem:[%s794 + $0x10] sm:$0xff]
                  %831 = vst [vmem:[%s795 + $0x14] sm:$0xff] %v830
                  %v832 = vld [vmem:[%s794 + $0x18] sm:$0xff]
                  %833 = vst [vmem:[%s795 + $0x1c] sm:$0xff] %v832
                  %v834 = vld [vmem:[%s794 + $0x20] sm:$0xff]
                  %835 = vst [vmem:[%s795 + $0x24] sm:$0xff] %v834
                  %v836 = vld [vmem:[%s794 + $0x28] sm:$0xff]
                  %837 = vst [vmem:[%s795 + $0x2c] sm:$0xff] %v836
                  %v838 = vld [vmem:[%s794 + $0x30] sm:$0xff]
                  %839 = vst [vmem:[%s795 + $0x34] sm:$0xff] %v838
                  %v840 = vld [vmem:[%s794 + $0x38] sm:$0xff]
                  %841 = vst [vmem:[%s795 + $0x3c] sm:$0xff] %v840
                  %v842 = vld [vmem:[%s794 + $0x40] sm:$0xff]
                  %843 = vst [vmem:[%s795 + $0x44] sm:$0xff] %v842
                  %v844 = vld [vmem:[%s794 + $0x48] sm:$0xff]
                  %845 = vst [vmem:[%s795 + $0x4c] sm:$0xff] %v844
                  %v846 = vld [vmem:[%s794 + $0x50] sm:$0xff]
                  %847 = vst [vmem:[%s795 + $0x54] sm:$0xff] %v846
                  %v848 = vld [vmem:[%s794 + $0x58] sm:$0xff]
                  %849 = vst [vmem:[%s795 + $0x5c] sm:$0xff] %v848
                  %v850 = vld [vmem:[%s794 + $0x60] sm:$0xff]
                  %851 = vst [vmem:[%s795 + $0x64] sm:$0xff] %v850
                  %v852 = vld [vmem:[%s794 + $0x68] sm:$0xff]
                  %853 = vst [vmem:[%s795 + $0x6c] sm:$0xff] %v852
                  %v854 = vld [vmem:[%s794 + $0x70] sm:$0xff]
                  %855 = vst [vmem:[%s795 + $0x74] sm:$0xff] %v854
                  %v856 = vld [vmem:[%s794 + $0x78] sm:$0xff]
                  %857 = vst [vmem:[%s795 + $0x7c] sm:$0xff] %v856
                  %v858 = vld [vmem:[%s794 + $0x80] sm:$0xff]
                  %859 = vst [vmem:[%s795 + $0x84] sm:$0xff] %v858
                  %s860 = sadd.s32 1, %s793
                  %p861 = scmp.ge.s32.totalorder %s860, %s786
                  %s862 = scalar_select %p861, 0, %s860
                  %s863 = smul.u32 %s862, 128
                  %s864 = smul.u32 %s862, 128
                  %s865 = scalar_lea.vmem %s743, %s863 [#allocation3]
                  %s866 = scalar_lea.vmem %s754, %s864
                $region130: #{convnet_forward.3} parent=124 // loop_footer
                  %s790 = sadd.s32 %s788, 1
                $region131: #{convnet_forward.3} parent=124 // loop_footer_branch
                  %787 = sbr.rel target = $region127
                $region132: #{convnet_forward.3} parent=124 // loop_exit
                  _
                %s867 = sshrl.u32 %s785, 4
                %s868 = sand.u32 %s785, 15
                %s869 = smul.u32 %s867, 16
                %s870 = smul.u32 8, %s869
                %s871 = scalar_lea.vmem %s743, %s870 [#allocation3]
                %s872 = smul.u32 8, %s869
                %s873 = scalar_lea.vmem %s754, %s872
                // While loop
                $region133: #{convnet_forward.3} parent=124 // loop_pre_header
                  _
                $region134: #{convnet_forward.3} parent=124 // loop_header
                  %s875 = sphi 0, %s877
                  %p876 = scmp.ge.s32.totalorder %s875, %s868
                  %s880 = sphi 0, %s889
                  %s881 = sphi %s871, %s892
                  %s882 = sphi %s873, %s893
                $region135: #{convnet_forward.3} parent=124 // loop_header_branch
                  %879 = sbr.rel (%p876) target = $region139
                $region136: #{convnet_forward.3} parent=124 // loop_body
                  %v883 = vld [vmem:[%s881] sm:$0xff]
                  %884 = vst [vmem:[%s882] sm:$0xff] %v883
                  %v885 = vld [vmem:[%s881 + $0x8] sm:$0xff]
                  %886 = vst [vmem:[%s882 + $0xc] sm:$0xff] %v885
                  %s887 = sadd.s32 1, %s880
                  %p888 = scmp.ge.s32.totalorder %s887, %s868
                  %s889 = scalar_select %p888, 0, %s887
                  %s890 = smul.u32 %s889, 8
                  %s891 = smul.u32 %s889, 8
                  %s892 = scalar_lea.vmem %s871, %s890 [#allocation3]
                  %s893 = scalar_lea.vmem %s873, %s891
                $region137: #{convnet_forward.3} parent=124 // loop_footer
                  %s877 = sadd.s32 %s875, 1
                $region138: #{convnet_forward.3} parent=124 // loop_footer_branch
                  %874 = sbr.rel target = $region134
                $region139: #{convnet_forward.3} parent=124 // loop_exit
                  _
              $region125: #{convnet_forward.3} parent=109 // pred_fallthru
                _
              %p894 = pneg %p781
              // Predicated region
              $region140: #{convnet_forward.3} parent=109 // pred_check
                _
              $region141: #{convnet_forward.3} parent=109 // pred_check_branch
                %896 = sbr.rel (%p781) target = $region143
              $region142: #{convnet_forward.3} parent=109 // pred_region
                %s897 = sand.u32 %s755, 7
                %s898 = ssub.s32 %s755, %s897
                %s899 = scalar_lea.vmem %s743, %s898 [#allocation3]
                %s900 = ssub.s32 %s755, %s897
                %s901 = scalar_lea.vmem %s754, %s900
                %s902 = sshrl.u32 %s755, 3
                %s903 = sshrl.u32 %s902, 4
                // While loop
                $region144: #{convnet_forward.3} parent=142 // loop_pre_header
                  _
                $region145: #{convnet_forward.3} parent=142 // loop_header
                  %s905 = sphi 0, %s907
                  %p906 = scmp.ge.s32.totalorder %s905, %s903
                  %s910 = sphi 0, %s979
                  %s911 = sphi %s743, %s982
                  %s912 = sphi %s754, %s983
                $region146: #{convnet_forward.3} parent=142 // loop_header_branch
                  %909 = sbr.rel (%p906) target = $region150
                $region147: #{convnet_forward.3} parent=142 // loop_body
                  %v913 = vld [vmem:[%s911] sm:$0xff]
                  %914 = vst [vmem:[%s912] sm:$0xff] %v913
                  %v915 = vld [vmem:[%s911 + $0x8] sm:$0xff]
                  %916 = vst [vmem:[%s912 + $0x8] sm:$0xff] %v915
                  %v917 = vld [vmem:[%s911 + $0x10] sm:$0xff]
                  %918 = vst [vmem:[%s912 + $0x10] sm:$0xff] %v917
                  %v919 = vld [vmem:[%s911 + $0x18] sm:$0xff]
                  %920 = vst [vmem:[%s912 + $0x18] sm:$0xff] %v919
                  %v921 = vld [vmem:[%s911 + $0x20] sm:$0xff]
                  %922 = vst [vmem:[%s912 + $0x20] sm:$0xff] %v921
                  %v923 = vld [vmem:[%s911 + $0x28] sm:$0xff]
                  %924 = vst [vmem:[%s912 + $0x28] sm:$0xff] %v923
                  %v925 = vld [vmem:[%s911 + $0x30] sm:$0xff]
                  %926 = vst [vmem:[%s912 + $0x30] sm:$0xff] %v925
                  %v927 = vld [vmem:[%s911 + $0x38] sm:$0xff]
                  %928 = vst [vmem:[%s912 + $0x38] sm:$0xff] %v927
                  %v929 = vld [vmem:[%s911 + $0x40] sm:$0xff]
                  %930 = vst [vmem:[%s912 + $0x40] sm:$0xff] %v929
                  %v931 = vld [vmem:[%s911 + $0x48] sm:$0xff]
                  %932 = vst [vmem:[%s912 + $0x48] sm:$0xff] %v931
                  %v933 = vld [vmem:[%s911 + $0x50] sm:$0xff]
                  %934 = vst [vmem:[%s912 + $0x50] sm:$0xff] %v933
                  %v935 = vld [vmem:[%s911 + $0x58] sm:$0xff]
                  %936 = vst [vmem:[%s912 + $0x58] sm:$0xff] %v935
                  %v937 = vld [vmem:[%s911 + $0x60] sm:$0xff]
                  %938 = vst [vmem:[%s912 + $0x60] sm:$0xff] %v937
                  %v939 = vld [vmem:[%s911 + $0x68] sm:$0xff]
                  %940 = vst [vmem:[%s912 + $0x68] sm:$0xff] %v939
                  %v941 = vld [vmem:[%s911 + $0x70] sm:$0xff]
                  %942 = vst [vmem:[%s912 + $0x70] sm:$0xff] %v941
                  %v943 = vld [vmem:[%s911 + $0x78] sm:$0xff]
                  %944 = vst [vmem:[%s912 + $0x78] sm:$0xff] %v943
                  %v945 = vld [vmem:[%s911 + $0x8] sm:$0xff]
                  %946 = vst [vmem:[%s912 + $0xc] sm:$0xff] %v945
                  %v947 = vld [vmem:[%s911 + $0x10] sm:$0xff]
                  %948 = vst [vmem:[%s912 + $0x14] sm:$0xff] %v947
                  %v949 = vld [vmem:[%s911 + $0x18] sm:$0xff]
                  %950 = vst [vmem:[%s912 + $0x1c] sm:$0xff] %v949
                  %v951 = vld [vmem:[%s911 + $0x20] sm:$0xff]
                  %952 = vst [vmem:[%s912 + $0x24] sm:$0xff] %v951
                  %v953 = vld [vmem:[%s911 + $0x28] sm:$0xff]
                  %954 = vst [vmem:[%s912 + $0x2c] sm:$0xff] %v953
                  %v955 = vld [vmem:[%s911 + $0x30] sm:$0xff]
                  %956 = vst [vmem:[%s912 + $0x34] sm:$0xff] %v955
                  %v957 = vld [vmem:[%s911 + $0x38] sm:$0xff]
                  %958 = vst [vmem:[%s912 + $0x3c] sm:$0xff] %v957
                  %v959 = vld [vmem:[%s911 + $0x40] sm:$0xff]
                  %960 = vst [vmem:[%s912 + $0x44] sm:$0xff] %v959
                  %v961 = vld [vmem:[%s911 + $0x48] sm:$0xff]
                  %962 = vst [vmem:[%s912 + $0x4c] sm:$0xff] %v961
                  %v963 = vld [vmem:[%s911 + $0x50] sm:$0xff]
                  %964 = vst [vmem:[%s912 + $0x54] sm:$0xff] %v963
                  %v965 = vld [vmem:[%s911 + $0x58] sm:$0xff]
                  %966 = vst [vmem:[%s912 + $0x5c] sm:$0xff] %v965
                  %v967 = vld [vmem:[%s911 + $0x60] sm:$0xff]
                  %968 = vst [vmem:[%s912 + $0x64] sm:$0xff] %v967
                  %v969 = vld [vmem:[%s911 + $0x68] sm:$0xff]
                  %970 = vst [vmem:[%s912 + $0x6c] sm:$0xff] %v969
                  %v971 = vld [vmem:[%s911 + $0x70] sm:$0xff]
                  %972 = vst [vmem:[%s912 + $0x74] sm:$0xff] %v971
                  %v973 = vld [vmem:[%s911 + $0x78] sm:$0xff]
                  %974 = vst [vmem:[%s912 + $0x7c] sm:$0xff] %v973
                  %v975 = vld [vmem:[%s911 + $0x80] sm:$0xff]
                  %976 = vst [vmem:[%s912 + $0x84] sm:$0xff] %v975
                  %s977 = sadd.s32 1, %s910
                  %p978 = scmp.ge.s32.totalorder %s977, %s903
                  %s979 = scalar_select %p978, 0, %s977
                  %s980 = smul.u32 %s979, 128
                  %s981 = smul.u32 %s979, 128
                  %s982 = scalar_lea.vmem %s743, %s980 [#allocation3]
                  %s983 = scalar_lea.vmem %s754, %s981
                $region148: #{convnet_forward.3} parent=142 // loop_footer
                  %s907 = sadd.s32 %s905, 1
                $region149: #{convnet_forward.3} parent=142 // loop_footer_branch
                  %904 = sbr.rel target = $region145
                $region150: #{convnet_forward.3} parent=142 // loop_exit
                  _
                %s984 = sshrl.u32 %s902, 4
                %s985 = sand.u32 %s902, 15
                %s986 = smul.u32 %s984, 16
                %s987 = smul.u32 8, %s986
                %s988 = scalar_lea.vmem %s743, %s987 [#allocation3]
                %s989 = smul.u32 8, %s986
                %s990 = scalar_lea.vmem %s754, %s989
                // While loop
                $region151: #{convnet_forward.3} parent=142 // loop_pre_header
                  _
                $region152: #{convnet_forward.3} parent=142 // loop_header
                  %s992 = sphi 0, %s994
                  %p993 = scmp.ge.s32.totalorder %s992, %s985
                  %s997 = sphi 0, %s1006
                  %s998 = sphi %s988, %s1009
                  %s999 = sphi %s990, %s1010
                $region153: #{convnet_forward.3} parent=142 // loop_header_branch
                  %996 = sbr.rel (%p993) target = $region157
                $region154: #{convnet_forward.3} parent=142 // loop_body
                  %v1000 = vld [vmem:[%s998] sm:$0xff]
                  %1001 = vst [vmem:[%s999] sm:$0xff] %v1000
                  %v1002 = vld [vmem:[%s998 + $0x8] sm:$0xff]
                  %1003 = vst [vmem:[%s999 + $0xc] sm:$0xff] %v1002
                  %s1004 = sadd.s32 1, %s997
                  %p1005 = scmp.ge.s32.totalorder %s1004, %s985
                  %s1006 = scalar_select %p1005, 0, %s1004
                  %s1007 = smul.u32 %s1006, 8
                  %s1008 = smul.u32 %s1006, 8
                  %s1009 = scalar_lea.vmem %s988, %s1007 [#allocation3]
                  %s1010 = scalar_lea.vmem %s990, %s1008
                $region155: #{convnet_forward.3} parent=142 // loop_footer
                  %s994 = sadd.s32 %s992, 1
                $region156: #{convnet_forward.3} parent=142 // loop_footer_branch
                  %991 = sbr.rel target = $region152
                $region157: #{convnet_forward.3} parent=142 // loop_exit
                  _
                %s1011 = sshll.u32 1, %s897
                %s1012 = ssub.s32 %s1011, 1
                loop: start=0, step=1, limit=1
                $region158: #{convnet_forward.3} parent=142 // loop_pre_header
                  _
                $region159: #{convnet_forward.3} parent=142 // loop_header
                  %s1014 = sphi 0, %s1018
                  %p1015 = scmp.ge.s32.totalorder %s1014, 1
                  %s1019 = sphi %s899, %s899
                  %s1020 = sphi %s901, %s901
                $region160: #{convnet_forward.3} parent=142 // loop_header_branch
                  %1017 = sbr.rel (%p1015) target = $region164
                $region161: #{convnet_forward.3} parent=142 // loop_body
                  %v1021 = vld [vmem:[%s1019] sm:%s1012]
                  %1022 = vst [vmem:[%s1020] sm:%s1012] %v1021
                  %v1023 = vld [vmem:[%s1019 + $0x8] sm:%s1012]
                  %1024 = vst [vmem:[%s1020 + $0xc] sm:%s1012] %v1023
                $region162: #{convnet_forward.3} parent=142 // loop_footer
                  %s1018 = sadd.s32 1, %s1014
                $region163: #{convnet_forward.3} parent=142 // loop_footer_branch
                  %1013 = sbr.rel target = $region159
                $region164: #{convnet_forward.3} parent=142 // loop_exit
                  _
              $region143: #{convnet_forward.3} parent=109 // pred_fallthru
                _
            $region110: #{convnet_forward.3} parent=105 // pred_fallthru
              _
            // Predicated region
            $region111: #{convnet_forward.3} parent=105 // pred_check
              %p763 = pneg %p759
            $region112: #{convnet_forward.3} parent=105 // pred_check_branch
              %765 = sbr.rel (%p763) target = $region114
            $region113: #{convnet_forward.3} parent=105 // pred_region
              %s766 = sshll.u32 1, %s755
              %s767 = ssub.s32 %s766, 1
              loop: start=0, step=1, limit=1
              $region115: #{convnet_forward.3} parent=113 // loop_pre_header
                _
              $region116: #{convnet_forward.3} parent=113 // loop_header
                %s769 = sphi 0, %s773
                %p770 = scmp.ge.s32.totalorder %s769, 1
                %s774 = sphi %s743, %s743
                %s775 = sphi %s754, %s754
              $region117: #{convnet_forward.3} parent=113 // loop_header_branch
                %772 = sbr.rel (%p770) target = $region121
              $region118: #{convnet_forward.3} parent=113 // loop_body
                %v776 = vld [vmem:[%s774] sm:%s767]
                %777 = vst [vmem:[%s775] sm:%s767] %v776
                %v778 = vld [vmem:[%s774 + $0x8] sm:%s767]
                %779 = vst [vmem:[%s775 + $0xc] sm:%s767] %v778
              $region119: #{convnet_forward.3} parent=113 // loop_footer
                %s773 = sadd.s32 1, %s769
              $region120: #{convnet_forward.3} parent=113 // loop_footer_branch
                %768 = sbr.rel target = $region116
              $region121: #{convnet_forward.3} parent=113 // loop_exit
                _
            $region114: #{convnet_forward.3} parent=105 // pred_fallthru
              _
          $region106: #{convnet_forward.3} parent=101 // pred_fallthru
            _
          %1025 = vnop
        $region102: #{convnet_forward.3} parent=93 // pred_fallthru
          _
      $region94: #{convnet_forward.3} parent=5 // pred_fallthru
        _
      %p1026 = scmp.le.s32.totalorder 2, %s9
      // Predicated region
      $region165: #{convnet_forward.3} parent=5 // pred_check
        %p1027 = pneg %p1026
      $region166: #{convnet_forward.3} parent=5 // pred_check_branch
        %1029 = sbr.rel (%p1027) target = $region168
      $region167: #{convnet_forward.3} parent=5 // pred_region
        %s1030 = ssub.s32 %s9, 2
        // Predicated region
        $region169: #{convnet_forward.3} parent=167 // pred_check
          %p1031 = pneg %p106
        $region170: #{convnet_forward.3} parent=167 // pred_check_branch
          %1033 = sbr.rel (%p1031) target = $region172
        $region171: #{convnet_forward.3} parent=167 // pred_region
          %s1034 = sand.u32 %s91, 1
          %s1035 = sand.u32 %s91, 1
          %s1036 = smul.addr %s1035, 16
          %s1037 = scalar_lea.vmem [#allocation3], %s1036
        $region172: #{convnet_forward.3} parent=167 // pred_fallthru
          _
      $region168: #{convnet_forward.3} parent=5 // pred_fallthru
        _
    $region6: #{convnet_forward.3} parent=1 // loop_footer
      %s13 = sadd.s32 1, %s9
    $region7: #{convnet_forward.3} parent=1 // loop_footer_branch
      %8 = sbr.rel target = $region3
    $region8: #{convnet_forward.3} parent=1 // loop_exit
      _

// kernel: convnet_forward.4
$region0: #{convnet_forward.4}
  #allocation0 [shape = 'u32[]', space=smem, size = 0x4, offset = 0x4, fixed_abs, tag = 'smem constant byte address 0x4 - core index']
  #allocation1 [shape = 'u32[72,128]{1,0:T(1,128)}', space=vmem, size = 0x9000, scoped, tag = 'internal scratch']
  %s0 = inlined_call_operand.vmem [shape: bf16[4,20,360], index: 0, kind: input, shape index: {}]
  %s1 = inlined_call_operand.vmem [shape: f32[20,1], index: 1, kind: input, shape index: {}]
  %s2 = inlined_call_operand.vmem [shape: bf16[360,32], index: 2, kind: input, shape index: {}]
  %s3 = inlined_call_operand.vmem [shape: bf16[20,32], index: 3, kind: output, shape index: {}]
  %s4 = sld [smem:[#allocation0]]
  $region22: #{convnet_forward.4} parent=0
    _
  %s6 = ssub.s32 1, %s4
  %s7 = scalar_select 0, %s6, %s4
  // Predicated region
  $region2: #{convnet_forward.4} parent=0 // pred_check
    _
  $region3: #{convnet_forward.4} parent=0 // pred_check_branch
    %9 = sbr.rel (0) target = $region5
  $region4: #{convnet_forward.4} parent=0 // pred_region
    _
  $region5: #{convnet_forward.4} parent=0 // pred_fallthru
    _
  // Predicated region
  $region6: #{convnet_forward.4} parent=0 // pred_check
    _
  $region7: #{convnet_forward.4} parent=0 // pred_check_branch
    %11 = sbr.rel (0) target = $region9
  $region8: #{convnet_forward.4} parent=0 // pred_region
    _
  $region9: #{convnet_forward.4} parent=0 // pred_fallthru
    _
  // Predicated region
  $region10: #{convnet_forward.4} parent=0 // pred_check
    _
  $region11: #{convnet_forward.4} parent=0 // pred_check_branch
    %13 = sbr.rel (0) target = $region13
  $region12: #{convnet_forward.4} parent=0 // pred_region
    _
  $region13: #{convnet_forward.4} parent=0 // pred_fallthru
    _
  %v15 = vld [vmem:[%s2] sm:$0xf]
  %v16 = vld [vmem:[%s2 + $0x4] sm:$0xf]
  %v17 = vld [vmem:[%s2 + $0x8] sm:$0xf]
  %v18 = vld [vmem:[%s2 + $0xc] sm:$0xf]
  %v19 = vld [vmem:[%s2 + $0x10] sm:$0xf]
  %v20 = vld [vmem:[%s2 + $0x14] sm:$0xf]
  %v21 = vld [vmem:[%s2 + $0x18] sm:$0xf]
  %v22 = vld [vmem:[%s2 + $0x1c] sm:$0xf]
  %v23 = vld [vmem:[%s2 + $0x20] sm:$0xf]
  %v24 = vld [vmem:[%s2 + $0x24] sm:$0xf]
  %v25 = vld [vmem:[%s2 + $0x28] sm:$0xf]
  %v26 = vld [vmem:[%s2 + $0x2c] sm:$0xf]
  %v27 = vld [vmem:[%s2 + $0x30] sm:$0xf]
  %v28 = vld [vmem:[%s2 + $0x34] sm:$0xf]
  %v29 = vld [vmem:[%s2 + $0x38] sm:$0xf]
  %v30 = vld [vmem:[%s2 + $0x3c] sm:$0xf]
  %v31 = vld [vmem:[%s2 + $0x40] sm:$0xf]
  %v32 = vld [vmem:[%s2 + $0x44] sm:$0xf]
  %v33 = vld [vmem:[%s2 + $0x48] sm:$0xf]
  %v34 = vld [vmem:[%s2 + $0x4c] sm:$0xf]
  %v35 = vld [vmem:[%s2 + $0x50] sm:$0xf]
  %v36 = vld [vmem:[%s2 + $0x54] sm:$0xf]
  %v37 = vld [vmem:[%s2 + $0x58] sm:$0xf]
  %v38 = vld [vmem:[%s2 + $0x5c] sm:$0xf]
  %v39 = vld [vmem:[%s2 + $0x60] sm:$0xf]
  %v40 = vld [vmem:[%s2 + $0x64] sm:$0xf]
  %v41 = vld [vmem:[%s2 + $0x68] sm:$0xf]
  %v42 = vld [vmem:[%s2 + $0x6c] sm:$0xf]
  %v43 = vld [vmem:[%s2 + $0x70] sm:$0xf]
  %v44 = vld [vmem:[%s2 + $0x74] sm:$0xf]
  %v45 = vld [vmem:[%s2 + $0x78] sm:$0xf]
  %v46 = vld [vmem:[%s2 + $0x7c] sm:$0xf]
  %v47 = vld [vmem:[%s2 + $0x80] sm:$0xf]
  %v48 = vld [vmem:[%s2 + $0x84] sm:$0xf]
  %v49 = vld [vmem:[%s2 + $0x88] sm:$0xf]
  %v50 = vld [vmem:[%s2 + $0x8c] sm:$0xf]
  %v51 = vld [vmem:[%s2 + $0x90] sm:$0xf]
  %v52 = vld [vmem:[%s2 + $0x94] sm:$0xf]
  %v53 = vld [vmem:[%s2 + $0x98] sm:$0xf]
  %v54 = vld [vmem:[%s2 + $0x9c] sm:$0xf]
  %v55 = vld [vmem:[%s2 + $0xa0] sm:$0xf]
  %v56 = vld [vmem:[%s2 + $0xa4] sm:$0xf]
  %v57 = vld [vmem:[%s2 + $0xa8] sm:$0xf]
  %v58 = vld [vmem:[%s2 + $0xac] sm:$0xf]
  %v59 = vld [vmem:[%s2 + $0xb0] sm:$0xf]
  %v60 = vld [vmem:[%s0] sm:$0xff]
  %v61 = vld [vmem:[%s0 + $0x8] sm:$0xf]
  %v62 = vld [vmem:[%s0 + $0xc] sm:$0xff]
  %v63 = vld [vmem:[%s0 + $0x14] sm:$0xf]
  %v64 = vld [vmem:[%s0 + $0x18] sm:$0x33]
  %v65 = vld [vmem:[%s0 + $0x20] sm:$0x3]
  %v72 = vunpack.c.l.b16 %v60
  %v73 = vunpack.c.h.b16 %v60
  %v74 = vunpack.c.l.b16 %v61
  %v75 = vunpack.c.l.b16 %v62
  %v76 = vunpack.c.h.b16 %v62
  %v77 = vunpack.c.l.b16 %v63
  %v78 = vunpack.c.l.b16 %v64
  %v79 = vunpack.c.h.b16 %v64
  %v80 = vunpack.c.l.b16 %v65
  %v81 = vpack.c.b16 %v75, %v72
  %v82 = vpack.c.b16 %v76, %v73
  %v83 = vpack.c.b16 %v77, %v74
  %v84 = vpack.c.b16 %v78, %v78
  %v85 = vpack.c.b16 %v79, %v79
  %v86 = vpack.c.b16 %v80, %v80
  %v136 = vunpack.c.l.b16 %v15
  %v137 = vunpack.c.l.b16 %v16
  %v138 = vunpack.c.l.b16 %v17
  %v139 = vunpack.c.l.b16 %v18
  %v140 = vunpack.c.l.b16 %v19
  %v141 = vunpack.c.l.b16 %v20
  %v142 = vunpack.c.l.b16 %v21
  %v143 = vunpack.c.l.b16 %v22
  %v144 = vunpack.c.l.b16 %v23
  %v145 = vunpack.c.l.b16 %v24
  %v146 = vunpack.c.l.b16 %v25
  %v147 = vunpack.c.l.b16 %v26
  %v148 = vunpack.c.l.b16 %v27
  %v149 = vunpack.c.l.b16 %v28
  %v150 = vunpack.c.l.b16 %v29
  %v151 = vunpack.c.l.b16 %v30
  %v152 = vunpack.c.l.b16 %v31
  %v153 = vunpack.c.l.b16 %v32
  %v154 = vunpack.c.l.b16 %v33
  %v155 = vunpack.c.l.b16 %v34
  %v156 = vunpack.c.l.b16 %v35
  %v157 = vunpack.c.l.b16 %v36
  %v158 = vunpack.c.l.b16 %v37
  %v159 = vunpack.c.l.b16 %v38
  %v160 = vunpack.c.l.b16 %v39
  %v161 = vunpack.c.l.b16 %v40
  %v162 = vunpack.c.l.b16 %v41
  %v163 = vunpack.c.l.b16 %v42
  %v164 = vunpack.c.l.b16 %v43
  %v165 = vunpack.c.l.b16 %v44
  %v166 = vunpack.c.l.b16 %v45
  %v167 = vunpack.c.l.b16 %v46
  %v168 = vunpack.c.l.b16 %v47
  %v169 = vunpack.c.l.b16 %v48
  %v170 = vunpack.c.l.b16 %v49
  %v171 = vunpack.c.l.b16 %v50
  %v172 = vunpack.c.l.b16 %v51
  %v173 = vunpack.c.l.b16 %v52
  %v174 = vunpack.c.l.b16 %v53
  %v175 = vunpack.c.l.b16 %v54
  %v176 = vunpack.c.l.b16 %v55
  %v177 = vunpack.c.l.b16 %v56
  %v178 = vunpack.c.l.b16 %v57
  %v179 = vunpack.c.l.b16 %v58
  %v180 = vunpack.c.l.b16 %v59
  %v181 = vpack.c.b16 %v137, %v136
  %v182 = vpack.c.b16 %v139, %v138
  %v183 = vpack.c.b16 %v141, %v140
  %v184 = vpack.c.b16 %v143, %v142
  %v185 = vpack.c.b16 %v145, %v144
  %v186 = vpack.c.b16 %v147, %v146
  %v187 = vpack.c.b16 %v149, %v148
  %v188 = vpack.c.b16 %v151, %v150
  %v189 = vpack.c.b16 %v153, %v152
  %v190 = vpack.c.b16 %v155, %v154
  %v191 = vpack.c.b16 %v157, %v156
  %v192 = vpack.c.b16 %v159, %v158
  %v193 = vpack.c.b16 %v161, %v160
  %v194 = vpack.c.b16 %v163, %v162
  %v195 = vpack.c.b16 %v165, %v164
  %v196 = vpack.c.b16 %v167, %v166
  %v197 = vpack.c.b16 %v169, %v168
  %v198 = vpack.c.b16 %v171, %v170
  %v199 = vpack.c.b16 %v173, %v172
  %v200 = vpack.c.b16 %v175, %v174
  %v201 = vpack.c.b16 %v177, %v176
  %v202 = vpack.c.b16 %v179, %v178
  %v203 = vpack.c.b16 %v180, %v180
  %vm226 = vcmask 850944
  %v228 = vsel %vm226, %v83, 0
  %v231 = vsel %vm226, %v86, 0
  %vm233 = vcmask 1043456
  %v235 = vsel %vm233, %v203, 0
  %237 = vmatpush.bf16.msra.mxu0 %v188
  %238 = vmatpush.bf16.msra.mxu0 %v187
  %239 = vmatpush.bf16.msra.mxu0 %v186
  %240 = vmatpush.bf16.msra.mxu0 %v185
  %241 = vmatpush.bf16.msra.mxu0 %v184
  %242 = vmatpush.bf16.msra.mxu0 %v183
  %243 = vmatpush.bf16.msra.mxu0 %v182
  %244 = vmatpush.bf16.msra.mxu0 %v181
  %245 = vmatmul.bf16.gmra.mxu0 %v81
  %v246 = vpop.f32.mrf.mxu0
  %v247 = vadd.f32 0.0, %v246
  %v248 = vpop.f32.mrf.mxu0
  %v249 = vadd.f32 0.0, %v248
  %250 = vmatmul.bf16.gmra.mxu0 %v84
  %v251 = vpop.f32.mrf.mxu0
  %v252 = vadd.f32 0.0, %v251
  %v253 = vpop.f32.mrf.mxu0
  %254 = vdwg.mxu0
  %255 = vmatpush.bf16.msra.mxu0 %v196
  %256 = vmatpush.bf16.msra.mxu0 %v195
  %257 = vmatpush.bf16.msra.mxu0 %v194
  %258 = vmatpush.bf16.msra.mxu0 %v193
  %259 = vmatpush.bf16.msra.mxu0 %v192
  %260 = vmatpush.bf16.msra.mxu0 %v191
  %261 = vmatpush.bf16.msra.mxu0 %v190
  %262 = vmatpush.bf16.msra.mxu0 %v189
  %263 = vmatmul.bf16.gmra.mxu0 %v82
  %v264 = vpop.f32.mrf.mxu0
  %v265 = vadd.f32 %v247, %v264
  %v266 = vpop.f32.mrf.mxu0
  %v267 = vadd.f32 %v249, %v266
  %268 = vmatmul.bf16.gmra.mxu0 %v85
  %v269 = vpop.f32.mrf.mxu0
  %v270 = vadd.f32 %v252, %v269
  %v271 = vpop.f32.mrf.mxu0
  %272 = vdwg.mxu0
  %273 = vmatpush.bf16.msra.mxu0 0
  %274 = vmatpush.bf16.msra.mxu0 %v235
  %275 = vmatpush.bf16.msra.mxu0 %v202
  %276 = vmatpush.bf16.msra.mxu0 %v201
  %277 = vmatpush.bf16.msra.mxu0 %v200
  %278 = vmatpush.bf16.msra.mxu0 %v199
  %279 = vmatpush.bf16.msra.mxu0 %v198
  %280 = vmatpush.bf16.msra.mxu0 %v197
  %281 = vmatmul.bf16.gmra.mxu0 %v228
  %v282 = vpop.f32.mrf.mxu0
  %v283 = vadd.f32 %v265, %v282
  %v284 = vpop.f32.mrf.mxu0
  %v285 = vadd.f32 %v267, %v284
  %286 = vmatmul.bf16.gmra.mxu0 %v231
  %v287 = vpop.f32.mrf.mxu0
  %v288 = vadd.f32 %v270, %v287
  %v289 = vpop.f32.mrf.mxu0
  %290 = vdwg.mxu0
  %s291 = scalar_lea.vmem %s0, 36
  %v292 = vld [vmem:[%s291] sm:$0xff]
  %v293 = vld [vmem:[%s291 + $0x8] sm:$0xf]
  %v294 = vld [vmem:[%s291 + $0xc] sm:$0xff]
  %v295 = vld [vmem:[%s291 + $0x14] sm:$0xf]
  %v296 = vld [vmem:[%s291 + $0x18] sm:$0x33]
  %v297 = vld [vmem:[%s291 + $0x20] sm:$0x3]
  %v304 = vunpack.c.l.b16 %v292
  %v305 = vunpack.c.h.b16 %v292
  %v306 = vunpack.c.l.b16 %v293
  %v307 = vunpack.c.l.b16 %v294
  %v308 = vunpack.c.h.b16 %v294
  %v309 = vunpack.c.l.b16 %v295
  %v310 = vunpack.c.l.b16 %v296
  %v311 = vunpack.c.h.b16 %v296
  %v312 = vunpack.c.l.b16 %v297
  %v313 = vpack.c.b16 %v307, %v304
  %v314 = vpack.c.b16 %v308, %v305
  %v315 = vpack.c.b16 %v309, %v306
  %v316 = vpack.c.b16 %v310, %v310
  %v317 = vpack.c.b16 %v311, %v311
  %v318 = vpack.c.b16 %v312, %v312
  %v324 = vsel %vm226, %v315, 0
  %v327 = vsel %vm226, %v318, 0
  %329 = vmatpush.bf16.msra.mxu0 %v188
  %330 = vmatpush.bf16.msra.mxu0 %v187
  %331 = vmatpush.bf16.msra.mxu0 %v186
  %332 = vmatpush.bf16.msra.mxu0 %v185
  %333 = vmatpush.bf16.msra.mxu0 %v184
  %334 = vmatpush.bf16.msra.mxu0 %v183
  %335 = vmatpush.bf16.msra.mxu0 %v182
  %336 = vmatpush.bf16.msra.mxu0 %v181
  %337 = vmatmul.bf16.gmra.mxu0 %v313
  %v338 = vpop.f32.mrf.mxu0
  %v339 = vadd.f32 0.0, %v338
  %v340 = vpop.f32.mrf.mxu0
  %v341 = vadd.f32 0.0, %v340
  %342 = vmatmul.bf16.gmra.mxu0 %v316
  %v343 = vpop.f32.mrf.mxu0
  %v344 = vadd.f32 0.0, %v343
  %v345 = vpop.f32.mrf.mxu0
  %346 = vdwg.mxu0
  %347 = vmatpush.bf16.msra.mxu0 %v196
  %348 = vmatpush.bf16.msra.mxu0 %v195
  %349 = vmatpush.bf16.msra.mxu0 %v194
  %350 = vmatpush.bf16.msra.mxu0 %v193
  %351 = vmatpush.bf16.msra.mxu0 %v192
  %352 = vmatpush.bf16.msra.mxu0 %v191
  %353 = vmatpush.bf16.msra.mxu0 %v190
  %354 = vmatpush.bf16.msra.mxu0 %v189
  %355 = vmatmul.bf16.gmra.mxu0 %v314
  %v356 = vpop.f32.mrf.mxu0
  %v357 = vadd.f32 %v339, %v356
  %v358 = vpop.f32.mrf.mxu0
  %v359 = vadd.f32 %v341, %v358
  %360 = vmatmul.bf16.gmra.mxu0 %v317
  %v361 = vpop.f32.mrf.mxu0
  %v362 = vadd.f32 %v344, %v361
  %v363 = vpop.f32.mrf.mxu0
  %364 = vdwg.mxu0
  %365 = vmatpush.bf16.msra.mxu0 0
  %366 = vmatpush.bf16.msra.mxu0 %v235
  %367 = vmatpush.bf16.msra.mxu0 %v202
  %368 = vmatpush.bf16.msra.mxu0 %v201
  %369 = vmatpush.bf16.msra.mxu0 %v200
  %370 = vmatpush.bf16.msra.mxu0 %v199
  %371 = vmatpush.bf16.msra.mxu0 %v198
  %372 = vmatpush.bf16.msra.mxu0 %v197
  %373 = vmatmul.bf16.gmra.mxu0 %v324
  %v374 = vpop.f32.mrf.mxu0
  %v375 = vadd.f32 %v357, %v374
  %v376 = vpop.f32.mrf.mxu0
  %v377 = vadd.f32 %v359, %v376
  %378 = vmatmul.bf16.gmra.mxu0 %v327
  %v379 = vpop.f32.mrf.mxu0
  %v380 = vadd.f32 %v362, %v379
  %v381 = vpop.f32.mrf.mxu0
  %382 = vdwg.mxu0
  %v383 = vmax.f32 %v283, %v375
  %v384 = vmax.f32 %v285, %v377
  %v385 = vmax.f32 %v288, %v380
  %s386 = scalar_lea.vmem %s0, 72
  %v387 = vld [vmem:[%s386] sm:$0xff]
  %v388 = vld [vmem:[%s386 + $0x8] sm:$0xf]
  %v389 = vld [vmem:[%s386 + $0xc] sm:$0xff]
  %v390 = vld [vmem:[%s386 + $0x14] sm:$0xf]
  %v391 = vld [vmem:[%s386 + $0x18] sm:$0x33]
  %v392 = vld [vmem:[%s386 + $0x20] sm:$0x3]
  %v399 = vunpack.c.l.b16 %v387
  %v400 = vunpack.c.h.b16 %v387
  %v401 = vunpack.c.l.b16 %v388
  %v402 = vunpack.c.l.b16 %v389
  %v403 = vunpack.c.h.b16 %v389
  %v404 = vunpack.c.l.b16 %v390
  %v405 = vunpack.c.l.b16 %v391
  %v406 = vunpack.c.h.b16 %v391
  %v407 = vunpack.c.l.b16 %v392
  %v408 = vpack.c.b16 %v402, %v399
  %v409 = vpack.c.b16 %v403, %v400
  %v410 = vpack.c.b16 %v404, %v401
  %v411 = vpack.c.b16 %v405, %v405
  %v412 = vpack.c.b16 %v406, %v406
  %v413 = vpack.c.b16 %v407, %v407
  %v419 = vsel %vm226, %v410, 0
  %v422 = vsel %vm226, %v413, 0
  %424 = vmatpush.bf16.msra.mxu0 %v188
  %425 = vmatpush.bf16.msra.mxu0 %v187
  %426 = vmatpush.bf16.msra.mxu0 %v186
  %427 = vmatpush.bf16.msra.mxu0 %v185
  %428 = vmatpush.bf16.msra.mxu0 %v184
  %429 = vmatpush.bf16.msra.mxu0 %v183
  %430 = vmatpush.bf16.msra.mxu0 %v182
  %431 = vmatpush.bf16.msra.mxu0 %v181
  %432 = vmatmul.bf16.gmra.mxu0 %v408
  %v433 = vpop.f32.mrf.mxu0
  %v434 = vadd.f32 0.0, %v433
  %v435 = vpop.f32.mrf.mxu0
  %v436 = vadd.f32 0.0, %v435
  %437 = vmatmul.bf16.gmra.mxu0 %v411
  %v438 = vpop.f32.mrf.mxu0
  %v439 = vadd.f32 0.0, %v438
  %v440 = vpop.f32.mrf.mxu0
  %441 = vdwg.mxu0
  %442 = vmatpush.bf16.msra.mxu0 %v196
  %443 = vmatpush.bf16.msra.mxu0 %v195
  %444 = vmatpush.bf16.msra.mxu0 %v194
  %445 = vmatpush.bf16.msra.mxu0 %v193
  %446 = vmatpush.bf16.msra.mxu0 %v192
  %447 = vmatpush.bf16.msra.mxu0 %v191
  %448 = vmatpush.bf16.msra.mxu0 %v190
  %449 = vmatpush.bf16.msra.mxu0 %v189
  %450 = vmatmul.bf16.gmra.mxu0 %v409
  %v451 = vpop.f32.mrf.mxu0
  %v452 = vadd.f32 %v434, %v451
  %v453 = vpop.f32.mrf.mxu0
  %v454 = vadd.f32 %v436, %v453
  %455 = vmatmul.bf16.gmra.mxu0 %v412
  %v456 = vpop.f32.mrf.mxu0
  %v457 = vadd.f32 %v439, %v456
  %v458 = vpop.f32.mrf.mxu0
  %459 = vdwg.mxu0
  %460 = vmatpush.bf16.msra.mxu0 0
  %461 = vmatpush.bf16.msra.mxu0 %v235
  %462 = vmatpush.bf16.msra.mxu0 %v202
  %463 = vmatpush.bf16.msra.mxu0 %v201
  %464 = vmatpush.bf16.msra.mxu0 %v200
  %465 = vmatpush.bf16.msra.mxu0 %v199
  %466 = vmatpush.bf16.msra.mxu0 %v198
  %467 = vmatpush.bf16.msra.mxu0 %v197
  %468 = vmatmul.bf16.gmra.mxu0 %v419
  %v469 = vpop.f32.mrf.mxu0
  %v470 = vadd.f32 %v452, %v469
  %v471 = vpop.f32.mrf.mxu0
  %v472 = vadd.f32 %v454, %v471
  %473 = vmatmul.bf16.gmra.mxu0 %v422
  %v474 = vpop.f32.mrf.mxu0
  %v475 = vadd.f32 %v457, %v474
  %v476 = vpop.f32.mrf.mxu0
  %477 = vdwg.mxu0
  %v478 = vmax.f32 %v383, %v470
  %v479 = vmax.f32 %v384, %v472
  %v480 = vmax.f32 %v385, %v475
  %s481 = scalar_lea.vmem %s0, 108
  %v482 = vld [vmem:[%s481] sm:$0xff]
  %v483 = vld [vmem:[%s481 + $0x8] sm:$0xf]
  %v484 = vld [vmem:[%s481 + $0xc] sm:$0xff]
  %v485 = vld [vmem:[%s481 + $0x14] sm:$0xf]
  %v486 = vld [vmem:[%s481 + $0x18] sm:$0x33]
  %v487 = vld [vmem:[%s481 + $0x20] sm:$0x3]
  %v494 = vunpack.c.l.b16 %v482
  %v495 = vunpack.c.h.b16 %v482
  %v496 = vunpack.c.l.b16 %v483
  %v497 = vunpack.c.l.b16 %v484
  %v498 = vunpack.c.h.b16 %v484
  %v499 = vunpack.c.l.b16 %v485
  %v500 = vunpack.c.l.b16 %v486
  %v501 = vunpack.c.h.b16 %v486
  %v502 = vunpack.c.l.b16 %v487
  %v503 = vpack.c.b16 %v497, %v494
  %v504 = vpack.c.b16 %v498, %v495
  %v505 = vpack.c.b16 %v499, %v496
  %v506 = vpack.c.b16 %v500, %v500
  %v507 = vpack.c.b16 %v501, %v501
  %v508 = vpack.c.b16 %v502, %v502
  %v514 = vsel %vm226, %v505, 0
  %v517 = vsel %vm226, %v508, 0
  %519 = vmatpush.bf16.msra.mxu0 %v188
  %520 = vmatpush.bf16.msra.mxu0 %v187
  %521 = vmatpush.bf16.msra.mxu0 %v186
  %522 = vmatpush.bf16.msra.mxu0 %v185
  %523 = vmatpush.bf16.msra.mxu0 %v184
  %524 = vmatpush.bf16.msra.mxu0 %v183
  %525 = vmatpush.bf16.msra.mxu0 %v182
  %526 = vmatpush.bf16.msra.mxu0 %v181
  %527 = vmatmul.bf16.gmra.mxu0 %v503
  %v528 = vpop.f32.mrf.mxu0
  %v529 = vadd.f32 0.0, %v528
  %v530 = vpop.f32.mrf.mxu0
  %v531 = vadd.f32 0.0, %v530
  %532 = vmatmul.bf16.gmra.mxu0 %v506
  %v533 = vpop.f32.mrf.mxu0
  %v534 = vadd.f32 0.0, %v533
  %v535 = vpop.f32.mrf.mxu0
  %536 = vdwg.mxu0
  %537 = vmatpush.bf16.msra.mxu0 %v196
  %538 = vmatpush.bf16.msra.mxu0 %v195
  %539 = vmatpush.bf16.msra.mxu0 %v194
  %540 = vmatpush.bf16.msra.mxu0 %v193
  %541 = vmatpush.bf16.msra.mxu0 %v192
  %542 = vmatpush.bf16.msra.mxu0 %v191
  %543 = vmatpush.bf16.msra.mxu0 %v190
  %544 = vmatpush.bf16.msra.mxu0 %v189
  %545 = vmatmul.bf16.gmra.mxu0 %v504
  %v546 = vpop.f32.mrf.mxu0
  %v547 = vadd.f32 %v529, %v546
  %v548 = vpop.f32.mrf.mxu0
  %v549 = vadd.f32 %v531, %v548
  %550 = vmatmul.bf16.gmra.mxu0 %v507
  %v551 = vpop.f32.mrf.mxu0
  %v552 = vadd.f32 %v534, %v551
  %v553 = vpop.f32.mrf.mxu0
  %554 = vdwg.mxu0
  %555 = vmatpush.bf16.msra.mxu0 0
  %556 = vmatpush.bf16.msra.mxu0 %v235
  %557 = vmatpush.bf16.msra.mxu0 %v202
  %558 = vmatpush.bf16.msra.mxu0 %v201
  %559 = vmatpush.bf16.msra.mxu0 %v200
  %560 = vmatpush.bf16.msra.mxu0 %v199
  %561 = vmatpush.bf16.msra.mxu0 %v198
  %562 = vmatpush.bf16.msra.mxu0 %v197
  %563 = vmatmul.bf16.gmra.mxu0 %v514
  %v564 = vpop.f32.mrf.mxu0
  %v565 = vadd.f32 %v547, %v564
  %v566 = vpop.f32.mrf.mxu0
  %v567 = vadd.f32 %v549, %v566
  %568 = vmatmul.bf16.gmra.mxu0 %v517
  %v569 = vpop.f32.mrf.mxu0
  %v570 = vadd.f32 %v552, %v569
  %v571 = vpop.f32.mrf.mxu0
  %572 = vdwg.mxu0
  %v573 = vmax.f32 %v478, %v565
  %v574 = vmax.f32 %v479, %v567
  %v575 = vmax.f32 %v480, %v570
  %v576 = vld [vmem:[%s1] sm:$0xff]
  %v577 = vld [vmem:[%s1 + $0x8] sm:$0xff]
  %v578 = vld [vmem:[%s1 + $0x10] sm:$0xf]
  %580 = vset.pattern.permute.xlu0 0
  %581 = vperm.xlu0 %580, %v576
  %v582 = vpop.permute.xlu0 %581
  %585 = vset.pattern.permute.xlu0 0
  %586 = vperm.xlu0 %585, %v577
  %v587 = vpop.permute.xlu0 %586
  %590 = vset.pattern.permute.xlu0 0
  %591 = vperm.xlu0 %590, %v578
  %v592 = vpop.permute.xlu0 %591
  %v594 = vadd.f32 %v573, %v582
  %v595 = vadd.f32 %v574, %v587
  %v596 = vadd.f32 %v575, %v592
  %v597 = vmax.f32 %v594, 0.0
  %v598 = vmax.f32 %v595, 0.0
  %v599 = vmax.f32 %v596, 0.0
  %v600 = vpack.c.bf16 %v597, %v597
  %v601 = vpack.c.bf16 %v598, %v598
  %v602 = vpack.c.bf16 %v599, %v599
  %vm603 = vcmask 257024
  %604 = vst.msk [vmem:[%s3] sm:$0xf] %vm603, %v600
  %605 = vst.msk [vmem:[%s3 + $0x4] sm:$0xf] %vm603, %v601
  %vm606 = vcmask 254976
  %607 = vst.msk [vmem:[%s3 + $0x8] sm:$0x3] %vm606, %v602
  // Predicated region
  $region14: #{convnet_forward.4} parent=0 // pred_check
    _
  $region15: #{convnet_forward.4} parent=0 // pred_check_branch
    %609 = sbr.rel (0) target = $region17
  $region16: #{convnet_forward.4} parent=0 // pred_region
    _
  $region17: #{convnet_forward.4} parent=0 // pred_fallthru
    _
  // Predicated region
  $region18: #{convnet_forward.4} parent=0 // pred_check
    _
  $region19: #{convnet_forward.4} parent=0 // pred_check_branch
    %611 = sbr.rel (0) target = $region21
  $region20: #{convnet_forward.4} parent=0 // pred_region
    _
  $region21: #{convnet_forward.4} parent=0 // pred_fallthru
    _

// kernel: convnet_forward.5
$region0: #{convnet_forward.5}
  #allocation0 [shape = 'u32[]', space=smem, size = 0x4, offset = 0x4, fixed_abs, tag = 'smem constant byte address 0x4 - core index']
  #allocation1 [shape = 'u32[72,128]{1,0:T(1,128)}', space=vmem, size = 0x9000, scoped, tag = 'internal scratch']
  %s0 = inlined_call_operand.vmem [shape: bf16[50,320], index: 0, kind: input, shape index: {}]
  %s1 = inlined_call_operand.vmem [shape: f32[50,1], index: 1, kind: input, shape index: {}]
  %s2 = inlined_call_operand.vmem [shape: bf16[10,50], index: 2, kind: input, shape index: {}]
  %s3 = inlined_call_operand.vmem [shape: f32[10,1], index: 3, kind: input, shape index: {}]
  %s4 = inlined_call_operand.vmem [shape: bf16[320,2], index: 4, kind: input, shape index: {}]
  %s5 = inlined_call_operand.vmem [shape: f32[10,2], index: 5, kind: output, shape index: {}]
  %s6 = sld [smem:[#allocation0]]
  $region30: #{convnet_forward.5} parent=0
    _
  %s8 = ssub.s32 1, %s6
  %s9 = scalar_select 0, %s8, %s6
  // Predicated region
  $region2: #{convnet_forward.5} parent=0 // pred_check
    _
  $region3: #{convnet_forward.5} parent=0 // pred_check_branch
    %11 = sbr.rel (0) target = $region5
  $region4: #{convnet_forward.5} parent=0 // pred_region
    _
  $region5: #{convnet_forward.5} parent=0 // pred_fallthru
    _
  // Predicated region
  $region6: #{convnet_forward.5} parent=0 // pred_check
    _
  $region7: #{convnet_forward.5} parent=0 // pred_check_branch
    %13 = sbr.rel (0) target = $region9
  $region8: #{convnet_forward.5} parent=0 // pred_region
    _
  $region9: #{convnet_forward.5} parent=0 // pred_fallthru
    _
  // Predicated region
  $region10: #{convnet_forward.5} parent=0 // pred_check
    _
  $region11: #{convnet_forward.5} parent=0 // pred_check_branch
    %15 = sbr.rel (0) target = $region13
  $region12: #{convnet_forward.5} parent=0 // pred_region
    _
  $region13: #{convnet_forward.5} parent=0 // pred_fallthru
    _
  // Predicated region
  $region14: #{convnet_forward.5} parent=0 // pred_check
    _
  $region15: #{convnet_forward.5} parent=0 // pred_check_branch
    %17 = sbr.rel (0) target = $region17
  $region16: #{convnet_forward.5} parent=0 // pred_region
    _
  $region17: #{convnet_forward.5} parent=0 // pred_fallthru
    _
  // Predicated region
  $region18: #{convnet_forward.5} parent=0 // pred_check
    _
  $region19: #{convnet_forward.5} parent=0 // pred_check_branch
    %19 = sbr.rel (0) target = $region21
  $region20: #{convnet_forward.5} parent=0 // pred_region
    _
  $region21: #{convnet_forward.5} parent=0 // pred_fallthru
    _
  %v21 = vld [vmem:[%s0] sm:$0xff]
  %v22 = vld [vmem:[%s0 + $0x8] sm:$0xf]
  %v23 = vld [vmem:[%s0 + $0xc] sm:$0xff]
  %v24 = vld [vmem:[%s0 + $0x14] sm:$0xf]
  %v25 = vld [vmem:[%s0 + $0x18] sm:$0xff]
  %v26 = vld [vmem:[%s0 + $0x20] sm:$0xf]
  %v27 = vld [vmem:[%s0 + $0x24] sm:$0xff]
  %v28 = vld [vmem:[%s0 + $0x2c] sm:$0xf]
  %v29 = vld [vmem:[%s0 + $0x30] sm:$0xff]
  %v30 = vld [vmem:[%s0 + $0x38] sm:$0xf]
  %v31 = vld [vmem:[%s0 + $0x3c] sm:$0xff]
  %v32 = vld [vmem:[%s0 + $0x44] sm:$0xf]
  %v33 = vld [vmem:[%s0 + $0x48] sm:$0x11]
  %v34 = vld [vmem:[%s0 + $0x50] sm:$0x1]
  %v35 = vld [vmem:[%s4] sm:$0xf]
  %v36 = vld [vmem:[%s4 + $0x4] sm:$0xf]
  %v37 = vld [vmem:[%s4 + $0x8] sm:$0xf]
  %v38 = vld [vmem:[%s4 + $0xc] sm:$0xf]
  %v39 = vld [vmem:[%s4 + $0x10] sm:$0xf]
  %v40 = vld [vmem:[%s4 + $0x14] sm:$0xf]
  %v41 = vld [vmem:[%s4 + $0x18] sm:$0xf]
  %v42 = vld [vmem:[%s4 + $0x1c] sm:$0xf]
  %v43 = vld [vmem:[%s4 + $0x20] sm:$0xf]
  %v44 = vld [vmem:[%s4 + $0x24] sm:$0xf]
  %v45 = vld [vmem:[%s4 + $0x28] sm:$0xf]
  %v46 = vld [vmem:[%s4 + $0x2c] sm:$0xf]
  %v47 = vld [vmem:[%s4 + $0x30] sm:$0xf]
  %v48 = vld [vmem:[%s4 + $0x34] sm:$0xf]
  %v49 = vld [vmem:[%s4 + $0x38] sm:$0xf]
  %v50 = vld [vmem:[%s4 + $0x3c] sm:$0xf]
  %v51 = vld [vmem:[%s4 + $0x40] sm:$0xf]
  %v52 = vld [vmem:[%s4 + $0x44] sm:$0xf]
  %v53 = vld [vmem:[%s4 + $0x48] sm:$0xf]
  %v54 = vld [vmem:[%s4 + $0x4c] sm:$0xf]
  %v55 = vld [vmem:[%s4 + $0x50] sm:$0xf]
  %v56 = vld [vmem:[%s4 + $0x54] sm:$0xf]
  %v57 = vld [vmem:[%s4 + $0x58] sm:$0xf]
  %v58 = vld [vmem:[%s4 + $0x5c] sm:$0xf]
  %v59 = vld [vmem:[%s4 + $0x60] sm:$0xf]
  %v60 = vld [vmem:[%s4 + $0x64] sm:$0xf]
  %v61 = vld [vmem:[%s4 + $0x68] sm:$0xf]
  %v62 = vld [vmem:[%s4 + $0x6c] sm:$0xf]
  %v63 = vld [vmem:[%s4 + $0x70] sm:$0xf]
  %v64 = vld [vmem:[%s4 + $0x74] sm:$0xf]
  %v65 = vld [vmem:[%s4 + $0x78] sm:$0xf]
  %v66 = vld [vmem:[%s4 + $0x7c] sm:$0xf]
  %v67 = vld [vmem:[%s4 + $0x80] sm:$0xf]
  %v68 = vld [vmem:[%s4 + $0x84] sm:$0xf]
  %v69 = vld [vmem:[%s4 + $0x88] sm:$0xf]
  %v70 = vld [vmem:[%s4 + $0x8c] sm:$0xf]
  %v71 = vld [vmem:[%s4 + $0x90] sm:$0xf]
  %v72 = vld [vmem:[%s4 + $0x94] sm:$0xf]
  %v73 = vld [vmem:[%s4 + $0x98] sm:$0xf]
  %v74 = vld [vmem:[%s4 + $0x9c] sm:$0xf]
  %v75 = vld [vmem:[%s1] sm:$0xff]
  %v76 = vld [vmem:[%s1 + $0x8] sm:$0xff]
  %v77 = vld [vmem:[%s1 + $0x10] sm:$0xff]
  %v78 = vld [vmem:[%s1 + $0x18] sm:$0xff]
  %v79 = vld [vmem:[%s1 + $0x20] sm:$0xff]
  %v80 = vld [vmem:[%s1 + $0x28] sm:$0xff]
  %v81 = vld [vmem:[%s1 + $0x30] sm:$0x3]
  %83 = vset.pattern.permute.xlu0 0
  %84 = vperm.xlu0 %83, %v75
  %v85 = vpop.permute.xlu0 %84
  %88 = vset.pattern.permute.xlu0 0
  %89 = vperm.xlu0 %88, %v76
  %v90 = vpop.permute.xlu0 %89
  %93 = vset.pattern.permute.xlu0 0
  %94 = vperm.xlu0 %93, %v77
  %v95 = vpop.permute.xlu0 %94
  %98 = vset.pattern.permute.xlu0 0
  %99 = vperm.xlu0 %98, %v78
  %v100 = vpop.permute.xlu0 %99
  %103 = vset.pattern.permute.xlu0 0
  %104 = vperm.xlu0 %103, %v79
  %v105 = vpop.permute.xlu0 %104
  %108 = vset.pattern.permute.xlu0 0
  %109 = vperm.xlu0 %108, %v80
  %v110 = vpop.permute.xlu0 %109
  %113 = vset.pattern.permute.xlu0 0
  %114 = vperm.xlu0 %113, %v81
  %v115 = vpop.permute.xlu0 %114
  %v131 = vunpack.c.l.b16 %v21
  %v132 = vunpack.c.h.b16 %v21
  %v133 = vunpack.c.l.b16 %v22
  %v134 = vunpack.c.l.b16 %v23
  %v135 = vunpack.c.h.b16 %v23
  %v136 = vunpack.c.l.b16 %v24
  %v137 = vunpack.c.l.b16 %v25
  %v138 = vunpack.c.h.b16 %v25
  %v139 = vunpack.c.l.b16 %v26
  %v140 = vunpack.c.l.b16 %v27
  %v141 = vunpack.c.h.b16 %v27
  %v142 = vunpack.c.l.b16 %v28
  %v143 = vunpack.c.l.b16 %v29
  %v144 = vunpack.c.h.b16 %v29
  %v145 = vunpack.c.l.b16 %v30
  %v146 = vunpack.c.l.b16 %v31
  %v147 = vunpack.c.h.b16 %v31
  %v148 = vunpack.c.l.b16 %v32
  %v149 = vunpack.c.l.b16 %v33
  %v150 = vunpack.c.h.b16 %v33
  %v151 = vunpack.c.l.b16 %v34
  %v152 = vpack.c.b16 %v134, %v131
  %v153 = vpack.c.b16 %v135, %v132
  %v154 = vpack.c.b16 %v136, %v133
  %v155 = vpack.c.b16 %v140, %v137
  %v156 = vpack.c.b16 %v141, %v138
  %v157 = vpack.c.b16 %v142, %v139
  %v158 = vpack.c.b16 %v146, %v143
  %v159 = vpack.c.b16 %v147, %v144
  %v160 = vpack.c.b16 %v148, %v145
  %v161 = vpack.c.b16 %v149, %v149
  %v162 = vpack.c.b16 %v150, %v150
  %v163 = vpack.c.b16 %v151, %v151
  %v212 = vunpack.c.l.b16 %v35
  %v213 = vunpack.c.l.b16 %v36
  %v214 = vunpack.c.l.b16 %v37
  %v215 = vunpack.c.l.b16 %v38
  %v216 = vunpack.c.l.b16 %v39
  %v217 = vunpack.c.l.b16 %v40
  %v218 = vunpack.c.l.b16 %v41
  %v219 = vunpack.c.l.b16 %v42
  %v220 = vunpack.c.l.b16 %v43
  %v221 = vunpack.c.l.b16 %v44
  %v222 = vunpack.c.l.b16 %v45
  %v223 = vunpack.c.l.b16 %v46
  %v224 = vunpack.c.l.b16 %v47
  %v225 = vunpack.c.l.b16 %v48
  %v226 = vunpack.c.l.b16 %v49
  %v227 = vunpack.c.l.b16 %v50
  %v228 = vunpack.c.l.b16 %v51
  %v229 = vunpack.c.l.b16 %v52
  %v230 = vunpack.c.l.b16 %v53
  %v231 = vunpack.c.l.b16 %v54
  %v232 = vunpack.c.l.b16 %v55
  %v233 = vunpack.c.l.b16 %v56
  %v234 = vunpack.c.l.b16 %v57
  %v235 = vunpack.c.l.b16 %v58
  %v236 = vunpack.c.l.b16 %v59
  %v237 = vunpack.c.l.b16 %v60
  %v238 = vunpack.c.l.b16 %v61
  %v239 = vunpack.c.l.b16 %v62
  %v240 = vunpack.c.l.b16 %v63
  %v241 = vunpack.c.l.b16 %v64
  %v242 = vunpack.c.l.b16 %v65
  %v243 = vunpack.c.l.b16 %v66
  %v244 = vunpack.c.l.b16 %v67
  %v245 = vunpack.c.l.b16 %v68
  %v246 = vunpack.c.l.b16 %v69
  %v247 = vunpack.c.l.b16 %v70
  %v248 = vunpack.c.l.b16 %v71
  %v249 = vunpack.c.l.b16 %v72
  %v250 = vunpack.c.l.b16 %v73
  %v251 = vunpack.c.l.b16 %v74
  %v252 = vpack.c.b16 %v213, %v212
  %v253 = vpack.c.b16 %v215, %v214
  %v254 = vpack.c.b16 %v217, %v216
  %v255 = vpack.c.b16 %v219, %v218
  %v256 = vpack.c.b16 %v221, %v220
  %v257 = vpack.c.b16 %v223, %v222
  %v258 = vpack.c.b16 %v225, %v224
  %v259 = vpack.c.b16 %v227, %v226
  %v260 = vpack.c.b16 %v229, %v228
  %v261 = vpack.c.b16 %v231, %v230
  %v262 = vpack.c.b16 %v233, %v232
  %v263 = vpack.c.b16 %v235, %v234
  %v264 = vpack.c.b16 %v237, %v236
  %v265 = vpack.c.b16 %v239, %v238
  %v266 = vpack.c.b16 %v241, %v240
  %v267 = vpack.c.b16 %v243, %v242
  %v268 = vpack.c.b16 %v245, %v244
  %v269 = vpack.c.b16 %v247, %v246
  %v270 = vpack.c.b16 %v249, %v248
  %v271 = vpack.c.b16 %v251, %v250
  %vm292 = vcmask 523264
  %v294 = vsel %vm292, %v154, 0
  %v297 = vsel %vm292, %v157, 0
  %v300 = vsel %vm292, %v160, 0
  %v303 = vsel %vm292, %v163, 0
  %305 = vmatpush.bf16.msra.mxu0 %v259
  %306 = vmatpush.bf16.msra.mxu0 %v258
  %307 = vmatpush.bf16.msra.mxu0 %v257
  %308 = vmatpush.bf16.msra.mxu0 %v256
  %309 = vmatpush.bf16.msra.mxu0 %v255
  %310 = vmatpush.bf16.msra.mxu0 %v254
  %311 = vmatpush.bf16.msra.mxu0 %v253
  %312 = vmatpush.bf16.msra.mxu0 %v252
  %313 = vmatmul.bf16.gmra.mxu0 %v152
  %v314 = vpop.f32.mrf.mxu0
  %v315 = vadd.f32 %v85, %v314
  %v316 = vpop.f32.mrf.mxu0
  %v317 = vadd.f32 %v90, %v316
  %318 = vmatmul.bf16.gmra.mxu0 %v155
  %v319 = vpop.f32.mrf.mxu0
  %v320 = vadd.f32 %v95, %v319
  %v321 = vpop.f32.mrf.mxu0
  %v322 = vadd.f32 %v100, %v321
  %323 = vmatmul.bf16.gmra.mxu0 %v158
  %v324 = vpop.f32.mrf.mxu0
  %v325 = vadd.f32 %v105, %v324
  %v326 = vpop.f32.mrf.mxu0
  %v327 = vadd.f32 %v110, %v326
  %328 = vmatmul.bf16.gmra.mxu0 %v161
  %v329 = vpop.f32.mrf.mxu0
  %v330 = vadd.f32 %v115, %v329
  %v331 = vpop.f32.mrf.mxu0
  %332 = vdwg.mxu0
  %333 = vmatpush.bf16.msra.mxu0 %v267
  %334 = vmatpush.bf16.msra.mxu0 %v266
  %335 = vmatpush.bf16.msra.mxu0 %v265
  %336 = vmatpush.bf16.msra.mxu0 %v264
  %337 = vmatpush.bf16.msra.mxu0 %v263
  %338 = vmatpush.bf16.msra.mxu0 %v262
  %339 = vmatpush.bf16.msra.mxu0 %v261
  %340 = vmatpush.bf16.msra.mxu0 %v260
  %341 = vmatmul.bf16.gmra.mxu0 %v153
  %v342 = vpop.f32.mrf.mxu0
  %v343 = vadd.f32 %v315, %v342
  %v344 = vpop.f32.mrf.mxu0
  %v345 = vadd.f32 %v317, %v344
  %346 = vmatmul.bf16.gmra.mxu0 %v156
  %v347 = vpop.f32.mrf.mxu0
  %v348 = vadd.f32 %v320, %v347
  %v349 = vpop.f32.mrf.mxu0
  %v350 = vadd.f32 %v322, %v349
  %351 = vmatmul.bf16.gmra.mxu0 %v159
  %v352 = vpop.f32.mrf.mxu0
  %v353 = vadd.f32 %v325, %v352
  %v354 = vpop.f32.mrf.mxu0
  %v355 = vadd.f32 %v327, %v354
  %356 = vmatmul.bf16.gmra.mxu0 %v162
  %v357 = vpop.f32.mrf.mxu0
  %v358 = vadd.f32 %v330, %v357
  %v359 = vpop.f32.mrf.mxu0
  %360 = vdwg.mxu0
  %361 = vmatpush.bf16.msra.mxu0 0
  %362 = vmatpush.bf16.msra.mxu0 0
  %363 = vmatpush.bf16.msra.mxu0 0
  %364 = vmatpush.bf16.msra.mxu0 0
  %365 = vmatpush.bf16.msra.mxu0 %v271
  %366 = vmatpush.bf16.msra.mxu0 %v270
  %367 = vmatpush.bf16.msra.mxu0 %v269
  %368 = vmatpush.bf16.msra.mxu0 %v268
  %369 = vmatmul.bf16.gmra.mxu0 %v294
  %v370 = vpop.f32.mrf.mxu0
  %v371 = vadd.f32 %v343, %v370
  %v372 = vpop.f32.mrf.mxu0
  %v373 = vadd.f32 %v345, %v372
  %374 = vmatmul.bf16.gmra.mxu0 %v297
  %v375 = vpop.f32.mrf.mxu0
  %v376 = vadd.f32 %v348, %v375
  %v377 = vpop.f32.mrf.mxu0
  %v378 = vadd.f32 %v350, %v377
  %379 = vmatmul.bf16.gmra.mxu0 %v300
  %v380 = vpop.f32.mrf.mxu0
  %v381 = vadd.f32 %v353, %v380
  %v382 = vpop.f32.mrf.mxu0
  %v383 = vadd.f32 %v355, %v382
  %384 = vmatmul.bf16.gmra.mxu0 %v303
  %v385 = vpop.f32.mrf.mxu0
  %v386 = vadd.f32 %v358, %v385
  %v387 = vpop.f32.mrf.mxu0
  %388 = vdwg.mxu0
  %v389 = vmax.f32 %v371, 0.0
  %v390 = vmax.f32 %v373, 0.0
  %v391 = vmax.f32 %v376, 0.0
  %v392 = vmax.f32 %v378, 0.0
  %v393 = vmax.f32 %v381, 0.0
  %v394 = vmax.f32 %v383, 0.0
  %v395 = vmax.f32 %v386, 0.0
  %v396 = vld [vmem:[%s2] sm:$0xf]
  %v397 = vld [vmem:[%s2 + $0x4] sm:$0x1]
  %v398 = vpack.c.bf16 %v390, %v389
  %v399 = vpack.c.bf16 %v392, %v391
  %v400 = vpack.c.bf16 %v394, %v393
  %v401 = vpack.c.bf16 %v395, %v395
  %v402 = vld [vmem:[%s3] sm:$0xff]
  %v403 = vld [vmem:[%s3 + $0x8] sm:$0x3]
  %405 = vset.pattern.permute.xlu0 0
  %406 = vperm.xlu0 %405, %v402
  %v407 = vpop.permute.xlu0 %406
  %410 = vset.pattern.permute.xlu0 0
  %411 = vperm.xlu0 %410, %v403
  %v412 = vpop.permute.xlu0 %411
  %v416 = vunpack.c.l.b16 %v396
  %v417 = vunpack.c.l.b16 %v397
  %v418 = vpack.c.b16 %v417, %v416
  %vm419 = vcmask 408576
  %v421 = vsel %vm419, %v418, 0
  %vm423 = vcmask 1040384
  %v425 = vsel %vm423, %v401, 0
  %427 = vmatpush.bf16.msra.mxu0 0
  %428 = vmatpush.bf16.msra.mxu0 0
  %429 = vmatpush.bf16.msra.mxu0 0
  %430 = vmatpush.bf16.msra.mxu0 0
  %431 = vmatpush.bf16.msra.mxu0 %v425
  %432 = vmatpush.bf16.msra.mxu0 %v400
  %433 = vmatpush.bf16.msra.mxu0 %v399
  %434 = vmatpush.bf16.msra.mxu0 %v398
  %435 = vmatmul.bf16.gmra.mxu0 %v421
  %v436 = vpop.f32.mrf.mxu0
  %v437 = vadd.f32 %v407, %v436
  %v438 = vpop.f32.mrf.mxu0
  %v439 = vadd.f32 %v412, %v438
  %440 = vdwg.mxu0
  %vm441 = vcmask 15360
  %v442 = vsel %vm441, %v437, -inf
  %vm443 = vcmask 9216
  %v444 = vsel %vm443, %v439, -inf
  %v445 = vmax.f32 %v442, %v444
  %v446 = vrot.slane %v445, 4
  %v447 = vmax.f32 %v445, %v446
  %v448 = vrot.slane %v447, 2
  %v449 = vmax.f32 %v447, %v448
  %v450 = vrot.slane %v449, 1
  %v451 = vmax.f32 %v449, %v450
  %v452 = vsub.f32 %v437, %v451
  %v453 = vsub.f32 %v439, %v451
  %v454 = vmul.f32 %v452, 1.442695
  %v455 = vpow.pop %v454
  %v456 = vmul.f32 %v453, 1.442695
  %v457 = vpow.pop %v456
  %v458 = vsel %vm441, %v455, 0.0
  %v459 = vsel %vm443, %v457, 0.0
  %v460 = vadd.f32 %v458, %v459
  %v461 = vrot.slane %v460, 4
  %v462 = vadd.f32 %v460, %v461
  %v463 = vrot.slane %v462, 2
  %v464 = vadd.f32 %v462, %v463
  %v465 = vrot.slane %v464, 1
  %v466 = vadd.f32 %v464, %v465
  %v467 = vlog2.pop %v466
  %v468 = vmul.f32 %v467, 0.6931472
  %v469 = vsub.f32 %v452, %v468
  %v470 = vsub.f32 %v453, %v468
  %471 = vst.msk [vmem:[%s5] sm:$0xff] %vm441, %v469
  %472 = vst.msk [vmem:[%s5 + $0x8] sm:$0x3] %vm443, %v470
  // Predicated region
  $region22: #{convnet_forward.5} parent=0 // pred_check
    _
  $region23: #{convnet_forward.5} parent=0 // pred_check_branch
    %474 = sbr.rel (0) target = $region25
  $region24: #{convnet_forward.5} parent=0 // pred_region
    _
  $region25: #{convnet_forward.5} parent=0 // pred_fallthru
    _
  // Predicated region
  $region26: #{convnet_forward.5} parent=0 // pred_check
    _
  $region27: #{convnet_forward.5} parent=0 // pred_check_branch
    %476 = sbr.rel (0) target = $region29
  $region28: #{convnet_forward.5} parent=0 // pred_region
    _
  $region29: #{convnet_forward.5} parent=0 // pred_fallthru
    _

</llo_original>
